<compile_context>
chip_gen: v5e
topology: v5e:2x2
jax: 0.10.0
libtpu: 0.0.40
codegen_flags: <defaults>
</compile_context>

<pallas_src>
import math

import jax
import jax.numpy as jnp
from jax.experimental import pallas as pl
from jax.experimental.pallas import tpu as pltpu

LN_EPS = 0.1
NORM_EPS = 1e-12          # guards all-zero input rows (negligible otherwise)
LOG2PI = math.log(2.0 * math.pi)
MIXTURE_WEIGHTS = (3.0 / 20.0, 3.0 / 4.0, 1.0 / 10.0)
LOGVAR_UNIFORM = 10.0

# Folded scalar constants for the mixture tail.
_C_STND = math.log(MIXTURE_WEIGHTS[0]) - 0.5 * LOG2PI
_C_POST = math.log(MIXTURE_WEIGHTS[1]) - 0.5 * LOG2PI
_C_UNIF = math.log(MIXTURE_WEIGHTS[2]) - 0.5 * (LOGVAR_UNIFORM + LOG2PI)
_INV_VAR_UNIF = math.exp(-LOGVAR_UNIFORM)


def _round_up(v, m):
    return (v + m - 1) // m * m


def _composite_prior_kernel(
    x_ref, z_ref,
    w1, b1, g1, be1,
    w2, b2, g2, be2,
    w3, b3, g3, be3,
    w4, b4, g4, be4,
    w5, b5, g5, be5,
    wh, bh,
    out_ref,
    acc_ref, ss_ref,
):
    k = pl.program_id(1)
    nk = pl.num_programs(1)

    @pl.when(k == 0)
    def _init():
        acc_ref[...] = jnp.zeros_like(acc_ref)
        ss_ref[...] = jnp.zeros_like(ss_ref)

    # Partial first matmul + partial squared row-norm for this K tile.
    x = x_ref[...].astype(jnp.float32)
    acc_ref[...] += jnp.dot(x, w1[...].astype(jnp.float32),
                            preferred_element_type=jnp.float32)
    ss_ref[...] += jnp.sum(x * x, axis=-1, keepdims=True)

    @pl.when(k == nk - 1)
    def _finish():
        def swish(v):
            return v * jax.nn.sigmoid(v)

        def layernorm(v, gamma, beta):
            mean = jnp.mean(v, axis=-1, keepdims=True)
            var = jnp.mean((v - mean) * (v - mean), axis=-1, keepdims=True)
            return (v - mean) * jax.lax.rsqrt(var + LN_EPS) * gamma[...] + beta[...]

        def linear(v, w, b):
            return jnp.dot(v, w[...].astype(jnp.float32),
                           preferred_element_type=jnp.float32) + b[...]

        # (x / ||x||) @ W1  ==  (x @ W1) * rsqrt(sum(x^2))
        inv_norm = jax.lax.rsqrt(ss_ref[...] + NORM_EPS)
        pre1 = acc_ref[...] * inv_norm + b1[...]

        h1 = layernorm(swish(pre1), g1, be1)
        res = h1
        h2 = layernorm(swish(linear(h1, w2, b2) + res), g2, be2)
        res = res + h2
        h3 = layernorm(swish(linear(h2, w3, b3) + res), g3, be3)
        res = res + h3
        h4 = layernorm(swish(linear(h3, w4, b4) + res), g4, be4)
        res = res + h4
        h5 = layernorm(swish(linear(h4, w5, b5) + res), g5, be5)

        # Fused mu/logvar head: one MXU matmul, split afterwards (both halves
        # lane-padded to a multiple of 128).
        heads = linear(h5, wh, bh)
        lat = z_ref.shape[-1]
        post_mu = heads[:, :lat]
        post_logvar = heads[:, lat:]

        z = z_ref[...].astype(jnp.float32)
        zz = z * z
        a = _C_STND - 0.5 * zz
        diff = z - post_mu
        b = _C_POST - 0.5 * (post_logvar + diff * diff * jnp.exp(-post_logvar))
        c = _C_UNIF - 0.5 * _INV_VAR_UNIF * zz

        m = jnp.maximum(jnp.maximum(a, b), c)
        out = m + jnp.log(jnp.exp(a - m) + jnp.exp(b - m) + jnp.exp(c - m))
        out_ref[...] = out.astype(out_ref.dtype)


def composite_prior(x, z, params, *, tile_b=256, tile_k=512,
                    weight_dtype=jnp.bfloat16):
    """params: flat tuple (w,b,gamma,beta)*5 + (wmu,bmu,wlv,blv), f32,
    linear weights stored as (in_features, out_features)."""
    (w1, b1, g1, be1,
     w2, b2, g2, be2,
     w3, b3, g3, be3,
     w4, b4, g4, be4,
     w5, b5, g5, be5,
     wmu, bmu, wlv, blv) = params

    B, K = x.shape
    Bz, L = z.shape
    assert Bz == B
    H = w1.shape[1]
    f32 = jnp.float32

    lat_pad = _round_up(L, 128)
    tile_b = min(tile_b, _round_up(B, 8))
    tile_k = min(tile_k, _round_up(K, 128))
    Bp = _round_up(B, tile_b)
    Kp = _round_up(K, tile_k)

    # Zero-padded batch rows / K columns contribute nothing to dot or sum(x^2).
    xp = jnp.pad(x.astype(f32), ((0, Bp - B), (0, Kp - K)))
    zp = jnp.pad(z.astype(f32), ((0, Bp - B), (0, lat_pad - L)))

    # Matmul weights streamed as bf16; compute stays f32 inside the kernel.
    w1p = jnp.pad(w1, ((0, Kp - K), (0, 0))).astype(weight_dtype)
    w2q, w3q, w4q, w5q = (w.astype(weight_dtype) for w in (w2, w3, w4, w5))

    # Fused, lane-padded mu/logvar head: (H, 2*lat_pad) weight, (1, 2*lat_pad) bias.
    wh = jnp.concatenate(
        [jnp.pad(wmu, ((0, 0), (0, lat_pad - L))),
         jnp.pad(wlv, ((0, 0), (0, lat_pad - L)))], axis=1).astype(weight_dtype)
    bh = jnp.concatenate(
        [jnp.pad(bmu, ((0, 0), (0, lat_pad - L))),
         jnp.pad(blv, ((0, 0), (0, lat_pad - L)))], axis=1).astype(f32)

    resident = (b1, g1, be1,
                w2q, b2, g2, be2,
                w3q, b3, g3, be3,
                w4q, b4, g4, be4,
                w5q, b5, g5, be5,
                wh, bh)

    def _full(arr):
        return pl.BlockSpec(arr.shape, lambda i, k: (0, 0))

    in_specs = [
        pl.BlockSpec((tile_b, tile_k), lambda i, k: (i, k)),    # x (batch & K tiled)
        pl.BlockSpec((tile_b, lat_pad), lambda i, k: (i, 0)),   # z (batch tiled)
        pl.BlockSpec((tile_k, H), lambda i, k: (k, 0)),         # w1 (K tiled)
    ] + [_full(a) for a in resident]

    out_spec = pl.BlockSpec((tile_b, lat_pad), lambda i, k: (i, 0))
    grid = (Bp // tile_b, Kp // tile_k)

    # Explicit VMEM budget (double-buffered tiles + resident weights + scratch).
    nbytes = lambda a: int(a.size) * a.dtype.itemsize
    wbytes = jnp.dtype(weight_dtype).itemsize
    tile_bytes = 2 * (tile_b * tile_k * 4 + tile_k * H * wbytes)       # x + w1 tiles
    tile_bytes += 2 * 2 * (tile_b * lat_pad * 4)                       # z + out tiles
    resident_bytes = 2 * sum(nbytes(a) for a in resident)
    scratch_bytes = 4 * (tile_b * H + tile_b * 128)
    vmem_limit = int(1.5 * (tile_bytes + resident_bytes + scratch_bytes)) + (2 << 20)
    vmem_limit = min(max(vmem_limit, 4 << 20), 64 << 20)

    out = pl.pallas_call(
        _composite_prior_kernel,
        out_shape=jax.ShapeDtypeStruct((Bp, lat_pad), jnp.float32),
        grid_spec=pltpu.PrefetchScalarGridSpec(
            num_scalar_prefetch=0,
            grid=grid,
            in_specs=in_specs,
            out_specs=out_spec,
            scratch_shapes=[
                pltpu.VMEM((tile_b, H), jnp.float32),   # x @ w1 accumulator
                pltpu.VMEM((tile_b, 1), jnp.float32),   # running sum(x^2)
            ],
        ),
        compiler_params=pltpu.CompilerParams(
            dimension_semantics=("parallel", "arbitrary"),
            vmem_limit_bytes=vmem_limit,
        ),
    )(xp, zp, w1p, *resident)

    return out[:B, :L]


def init_params(key, input_dim, hidden_dim, latent_dim):
    """Deterministic synthetic init (mimics nn.Linear uniform init scale)."""
    def linear_init(k, fan_in, fan_out):
        k1, k2 = jax.random.split(k)
        bound = 1.0 / math.sqrt(fan_in)
        w = jax.random.uniform(k1, (fan_in, fan_out), jnp.float32, -bound, bound)
        b = jax.random.uniform(k2, (1, fan_out), jnp.float32, -bound, bound)
        return w, b

    keys = jax.random.split(key, 7)
    params = []
    dims_in = [input_dim] + [hidden_dim] * 4
    for i in range(5):
        w, b = linear_init(keys[i], dims_in[i], hidden_dim)
        gamma = jnp.ones((1, hidden_dim), jnp.float32)
        beta = jnp.zeros((1, hidden_dim), jnp.float32)
        params += [w, b, gamma, beta]
    wmu, bmu = linear_init(keys[5], hidden_dim, latent_dim)
    wlv, blv = linear_init(keys[6], hidden_dim, latent_dim)
    params += [wmu, bmu, wlv, blv]
    return tuple(params)


def composite_prior_ref(x, z, params):
    """Pure-JAX reference (matches the PyTorch module)."""
    (w1, b1, g1, be1, w2, b2, g2, be2, w3, b3, g3, be3,
     w4, b4, g4, be4, w5, b5, g5, be5, wmu, bmu, wlv, blv) = params

    def swish(v):
        return v * jax.nn.sigmoid(v)

    def layernorm(v, gamma, beta):
        mean = jnp.mean(v, axis=-1, keepdims=True)
        var = jnp.mean((v - mean) ** 2, axis=-1, keepdims=True)
        return (v - mean) / jnp.sqrt(var + LN_EPS) * gamma + beta

    x = x / jnp.sqrt(jnp.sum(x * x, axis=-1, keepdims=True))
    h1 = layernorm(swish(x @ w1 + b1), g1, be1)
    h2 = layernorm(swish(h1 @ w2 + b2 + h1), g2, be2)
    h3 = layernorm(swish(h2 @ w3 + b3 + h1 + h2), g3, be3)
    h4 = layernorm(swish(h3 @ w4 + b4 + h1 + h2 + h3), g4, be4)
    h5 = layernorm(swish(h4 @ w5 + b5 + h1 + h2 + h3 + h4), g5, be5)
    post_mu = h5 @ wmu + bmu
    post_logvar = h5 @ wlv + blv

    def log_norm_pdf(zz, mu, logvar):
        return -0.5 * (logvar + LOG2PI + (zz - mu) ** 2 / jnp.exp(logvar))

    stnd = log_norm_pdf(z, 0.0, 0.0) + math.log(MIXTURE_WEIGHTS[0])
    post = log_norm_pdf(z, post_mu, post_logvar) + math.log(MIXTURE_WEIGHTS[1])
    unif = log_norm_pdf(z, 0.0, LOGVAR_UNIFORM) + math.log(MIXTURE_WEIGHTS[2])
    stacked = jnp.stack([stnd, post, unif], axis=-1)
    return jax.scipy.special.logsumexp(stacked, axis=-1)


def _quantize_weights_like_kernel(params, weight_dtype=jnp.bfloat16):
    """Round-trip the matmul weights through bf16 so the f32 reference uses the
    exact same weight values the kernel streams (biases/LN params stay f32)."""
    weight_idx = {0, 4, 8, 12, 16, 20, 22}
    return tuple(
        p.astype(weight_dtype).astype(jnp.float32) if i in weight_idx else p
        for i, p in enumerate(params))


if __name__ == "__main__":
    batch = 8
    input_dim = 64
    hidden_dim = 32
    latent_dim = 16

    key = jax.random.PRNGKey(0)
    kx, kz, kp = jax.random.split(key, 3)
    # Nonnegative "interaction count" style input (avoid zero rows).
    x = jax.random.uniform(kx, (batch, input_dim), jnp.float32, 0.0, 1.0) + 0.1
    z = jax.random.normal(kz, (batch, latent_dim), jnp.float32)
    params = init_params(kp, input_dim, hidden_dim, latent_dim)

    out = composite_prior(x, z, params)
    out = jax.block_until_ready(out)

    ref = composite_prior_ref(x, z, _quantize_weights_like_kernel(params))
    assert out.shape == (batch, latent_dim)
    err = jnp.max(jnp.abs(out - ref))
    assert jnp.allclose(out, ref, atol=1e-4, rtol=1e-4), f"mismatch vs reference (max abs err {err})"

    print("KERNEL_OK")
</pallas_src>

<mosaic_0001>
module attributes {stable_mosaic.version = 11 : i64} {
  func.func @_composite_prior_kernel(%arg0: i32, %arg1: i32, %arg2: memref<8x128xf32, #tpu.memory_space<vmem>>, %arg3: memref<8x128xf32, #tpu.memory_space<vmem>>, %arg4: memref<128x32xbf16, #tpu.memory_space<vmem>>, %arg5: memref<1x32xf32, #tpu.memory_space<vmem>>, %arg6: memref<1x32xf32, #tpu.memory_space<vmem>>, %arg7: memref<1x32xf32, #tpu.memory_space<vmem>>, %arg8: memref<32x32xbf16, #tpu.memory_space<vmem>>, %arg9: memref<1x32xf32, #tpu.memory_space<vmem>>, %arg10: memref<1x32xf32, #tpu.memory_space<vmem>>, %arg11: memref<1x32xf32, #tpu.memory_space<vmem>>, %arg12: memref<32x32xbf16, #tpu.memory_space<vmem>>, %arg13: memref<1x32xf32, #tpu.memory_space<vmem>>, %arg14: memref<1x32xf32, #tpu.memory_space<vmem>>, %arg15: memref<1x32xf32, #tpu.memory_space<vmem>>, %arg16: memref<32x32xbf16, #tpu.memory_space<vmem>>, %arg17: memref<1x32xf32, #tpu.memory_space<vmem>>, %arg18: memref<1x32xf32, #tpu.memory_space<vmem>>, %arg19: memref<1x32xf32, #tpu.memory_space<vmem>>, %arg20: memref<32x32xbf16, #tpu.memory_space<vmem>>, %arg21: memref<1x32xf32, #tpu.memory_space<vmem>>, %arg22: memref<1x32xf32, #tpu.memory_space<vmem>>, %arg23: memref<1x32xf32, #tpu.memory_space<vmem>>, %arg24: memref<32x256xbf16, #tpu.memory_space<vmem>>, %arg25: memref<1x256xf32, #tpu.memory_space<vmem>>, %arg26: memref<8x128xf32, #tpu.memory_space<vmem>>, %arg27: memref<8x32xf32, #tpu.memory_space<vmem>>, %arg28: memref<8x1xf32, #tpu.memory_space<vmem>>) attributes {dimension_semantics = [#tpu.dimension_semantics<parallel>, #tpu.dimension_semantics<arbitrary>], iteration_bounds = array<i64: 1, 1>, scalar_prefetch = 0 : i64, scratch_operands = 2 : i64, tpu.core_type = #tpu.core_type<tc>, window_params = [{transform_indices = @transform_0, window_bounds = array<i64: 8, 128>}, {transform_indices = @transform_1, window_bounds = array<i64: 8, 128>}, {transform_indices = @transform_2, window_bounds = array<i64: 128, 32>}, {pipeline_mode = #tpu.pipeline_mode<synchronous>, transform_indices = @transform_3, window_bounds = array<i64: 1, 32>}, {pipeline_mode = #tpu.pipeline_mode<synchronous>, transform_indices = @transform_4, window_bounds = array<i64: 1, 32>}, {pipeline_mode = #tpu.pipeline_mode<synchronous>, transform_indices = @transform_5, window_bounds = array<i64: 1, 32>}, {pipeline_mode = #tpu.pipeline_mode<synchronous>, transform_indices = @transform_6, window_bounds = array<i64: 32, 32>}, {pipeline_mode = #tpu.pipeline_mode<synchronous>, transform_indices = @transform_7, window_bounds = array<i64: 1, 32>}, {pipeline_mode = #tpu.pipeline_mode<synchronous>, transform_indices = @transform_8, window_bounds = array<i64: 1, 32>}, {pipeline_mode = #tpu.pipeline_mode<synchronous>, transform_indices = @transform_9, window_bounds = array<i64: 1, 32>}, {pipeline_mode = #tpu.pipeline_mode<synchronous>, transform_indices = @transform_10, window_bounds = array<i64: 32, 32>}, {pipeline_mode = #tpu.pipeline_mode<synchronous>, transform_indices = @transform_11, window_bounds = array<i64: 1, 32>}, {pipeline_mode = #tpu.pipeline_mode<synchronous>, transform_indices = @transform_12, window_bounds = array<i64: 1, 32>}, {pipeline_mode = #tpu.pipeline_mode<synchronous>, transform_indices = @transform_13, window_bounds = array<i64: 1, 32>}, {pipeline_mode = #tpu.pipeline_mode<synchronous>, transform_indices = @transform_14, window_bounds = array<i64: 32, 32>}, {pipeline_mode = #tpu.pipeline_mode<synchronous>, transform_indices = @transform_15, window_bounds = array<i64: 1, 32>}, {pipeline_mode = #tpu.pipeline_mode<synchronous>, transform_indices = @transform_16, window_bounds = array<i64: 1, 32>}, {pipeline_mode = #tpu.pipeline_mode<synchronous>, transform_indices = @transform_17, window_bounds = array<i64: 1, 32>}, {pipeline_mode = #tpu.pipeline_mode<synchronous>, transform_indices = @transform_18, window_bounds = array<i64: 32, 32>}, {pipeline_mode = #tpu.pipeline_mode<synchronous>, transform_indices = @transform_19, window_bounds = array<i64: 1, 32>}, {pipeline_mode = #tpu.pipeline_mode<synchronous>, transform_indices = @transform_20, window_bounds = array<i64: 1, 32>}, {pipeline_mode = #tpu.pipeline_mode<synchronous>, transform_indices = @transform_21, window_bounds = array<i64: 1, 32>}, {pipeline_mode = #tpu.pipeline_mode<synchronous>, transform_indices = @transform_22, window_bounds = array<i64: 32, 256>}, {pipeline_mode = #tpu.pipeline_mode<synchronous>, transform_indices = @transform_23, window_bounds = array<i64: 1, 256>}, {transform_indices = @transform_24, window_bounds = array<i64: 8, 128>}]} {
    %c0_i32 = arith.constant 0 : i32
    %0 = arith.cmpi eq, %arg1, %c0_i32 : i32
    %1 = arith.extui %0 : i1 to i32
    %c0_i32_0 = arith.constant 0 : i32
    %2 = arith.cmpi ne, %1, %c0_i32_0 : i32
    scf.if %2 {
      %cst_15 = arith.constant 0.000000e+00 : f32
      %19 = vector.broadcast %cst_15 : f32 to vector<8x32xf32>
      %c0_16 = arith.constant 0 : index
      %c0_17 = arith.constant 0 : index
      %20 = vector.load %arg27[%c0_16, %c0_17] : memref<8x32xf32, #tpu.memory_space<vmem>>, vector<8x32xf32>
      tpu.vector_store %arg27[%c0_16, %c0_17], %19 {strides = array<i32>} : memref<8x32xf32, #tpu.memory_space<vmem>>, vector<8x32xf32>,
      %cst_18 = arith.constant 0.000000e+00 : f32
      %21 = vector.broadcast %cst_18 : f32 to vector<8x1xf32>
      %c0_19 = arith.constant 0 : index
      %c0_20 = arith.constant 0 : index
      %22 = vector.load %arg28[%c0_19, %c0_20] : memref<8x1xf32, #tpu.memory_space<vmem>>, vector<8x1xf32>
      tpu.vector_store %arg28[%c0_19, %c0_20], %21 {strides = array<i32>} : memref<8x1xf32, #tpu.memory_space<vmem>>, vector<8x1xf32>,
    } else {
    }
    %c0 = arith.constant 0 : index
    %c0_1 = arith.constant 0 : index
    %3 = vector.load %arg2[%c0, %c0_1] : memref<8x128xf32, #tpu.memory_space<vmem>>, vector<8x128xf32>
    %c0_2 = arith.constant 0 : index
    %c0_3 = arith.constant 0 : index
    %4 = vector.load %arg27[%c0_2, %c0_3] : memref<8x32xf32, #tpu.memory_space<vmem>>, vector<8x32xf32>
    %c0_4 = arith.constant 0 : index
    %c0_5 = arith.constant 0 : index
    %5 = vector.load %arg4[%c0_4, %c0_5] : memref<128x32xbf16, #tpu.memory_space<vmem>>, vector<128x32xbf16>
    %6 = arith.extf %5 : vector<128x32xbf16> to vector<128x32xf32>
    %cst = arith.constant dense<0.000000e+00> : vector<8x32xf32>
    %7 = tpu.matmul %3, %6, %cst {dimension_numbers = #tpu.dot_dimension_numbers<[1], [0], [0], [1], [0, 0, 1, 1], [], []>} : vector<8x128xf32>, vector<128x32xf32>, vector<8x32xf32> -> vector<8x32xf32>
    %8 = arith.addf %4, %7 : vector<8x32xf32>
    %c0_6 = arith.constant 0 : index
    %c0_7 = arith.constant 0 : index
    %9 = vector.load %arg27[%c0_6, %c0_7] : memref<8x32xf32, #tpu.memory_space<vmem>>, vector<8x32xf32>
    tpu.vector_store %arg27[%c0_6, %c0_7], %8 {strides = array<i32>} : memref<8x32xf32, #tpu.memory_space<vmem>>, vector<8x32xf32>,
    %c0_8 = arith.constant 0 : index
    %c0_9 = arith.constant 0 : index
    %10 = vector.load %arg28[%c0_8, %c0_9] : memref<8x1xf32, #tpu.memory_space<vmem>>, vector<8x1xf32>
    %11 = arith.mulf %3, %3 : vector<8x128xf32>
    %cst_10 = arith.constant dense<0.000000e+00> : vector<8xf32>
    %12 = vector.multi_reduction <add>, %11, %cst_10 [1] : vector<8x128xf32> to vector<8xf32>
    %13 = vector.shape_cast %12 : vector<8xf32> to vector<8x1xf32>
    %14 = arith.addf %10, %13 : vector<8x1xf32>
    %c0_11 = arith.constant 0 : index
    %c0_12 = arith.constant 0 : index
    %15 = vector.load %arg28[%c0_11, %c0_12] : memref<8x1xf32, #tpu.memory_space<vmem>>, vector<8x1xf32>
    tpu.vector_store %arg28[%c0_11, %c0_12], %14 {strides = array<i32>} : memref<8x1xf32, #tpu.memory_space<vmem>>, vector<8x1xf32>,
    %c0_i32_13 = arith.constant 0 : i32
    %16 = arith.cmpi eq, %arg1, %c0_i32_13 : i32
    %17 = arith.extui %16 : i1 to i32
    %c0_i32_14 = arith.constant 0 : i32
    %18 = arith.cmpi ne, %17, %c0_i32_14 : i32
    scf.if %18 {
      %c0_15 = arith.constant 0 : index
      %c0_16 = arith.constant 0 : index
      %19 = vector.load %arg28[%c0_15, %c0_16] : memref<8x1xf32, #tpu.memory_space<vmem>>, vector<8x1xf32>
      %cst_17 = arith.constant 9.99999996E-13 : f32
      %20 = vector.broadcast %cst_17 : f32 to vector<8x1xf32>
      %21 = arith.addf %19, %20 : vector<8x1xf32>
      %22 = math.rsqrt %21 : vector<8x1xf32>
      %c0_18 = arith.constant 0 : index
      %c0_19 = arith.constant 0 : index
      %23 = vector.load %arg27[%c0_18, %c0_19] : memref<8x32xf32, #tpu.memory_space<vmem>>, vector<8x32xf32>
      %24 = vector.broadcast %22 : vector<8x1xf32> to vector<8x32xf32>
      %25 = arith.mulf %23, %24 : vector<8x32xf32>
      %c0_20 = arith.constant 0 : index
      %c0_21 = arith.constant 0 : index
      %26 = vector.load %arg5[%c0_20, %c0_21] : memref<1x32xf32, #tpu.memory_space<vmem>>, vector<1x32xf32>
      %27 = vector.broadcast %26 : vector<1x32xf32> to vector<8x32xf32>
      %28 = arith.addf %25, %27 : vector<8x32xf32>
      %29 = arith.negf %28 : vector<8x32xf32>
      %30 = math.exp %29 : vector<8x32xf32>
      %cst_22 = arith.constant 1.000000e+00 : f32
      %31 = vector.broadcast %cst_22 : f32 to vector<8x32xf32>
      %32 = arith.addf %31, %30 : vector<8x32xf32>
      %33 = arith.divf %31, %32 : vector<8x32xf32>
      %34 = arith.mulf %28, %33 : vector<8x32xf32>
      %cst_23 = arith.constant dense<0.000000e+00> : vector<8xf32>
      %35 = vector.multi_reduction <add>, %34, %cst_23 [1] : vector<8x32xf32> to vector<8xf32>
      %36 = vector.shape_cast %35 : vector<8xf32> to vector<8x1xf32>
      %cst_24 = arith.constant 3.200000e+01 : f32
      %37 = vector.broadcast %cst_24 : f32 to vector<8x1xf32>
      %38 = arith.divf %36, %37 : vector<8x1xf32>
      %39 = vector.broadcast %38 : vector<8x1xf32> to vector<8x32xf32>
      %40 = arith.subf %34, %39 : vector<8x32xf32>
      %41 = vector.broadcast %38 : vector<8x1xf32> to vector<8x32xf32>
      %42 = arith.subf %34, %41 : vector<8x32xf32>
      %43 = arith.mulf %40, %42 : vector<8x32xf32>
      %cst_25 = arith.constant dense<0.000000e+00> : vector<8xf32>
      %44 = vector.multi_reduction <add>, %43, %cst_25 [1] : vector<8x32xf32> to vector<8xf32>
      %45 = vector.shape_cast %44 : vector<8xf32> to vector<8x1xf32>
      %cst_26 = arith.constant 3.200000e+01 : f32
      %46 = vector.broadcast %cst_26 : f32 to vector<8x1xf32>
      %47 = arith.divf %45, %46 : vector<8x1xf32>
      %48 = vector.broadcast %38 : vector<8x1xf32> to vector<8x32xf32>
      %49 = arith.subf %34, %48 : vector<8x32xf32>
      %cst_27 = arith.constant 1.000000e-01 : f32
      %50 = vector.broadcast %cst_27 : f32 to vector<8x1xf32>
      %51 = arith.addf %47, %50 : vector<8x1xf32>
      %52 = math.rsqrt %51 : vector<8x1xf32>
      %53 = vector.broadcast %52 : vector<8x1xf32> to vector<8x32xf32>
      %54 = arith.mulf %49, %53 : vector<8x32xf32>
      %c0_28 = arith.constant 0 : index
      %c0_29 = arith.constant 0 : index
      %55 = vector.load %arg6[%c0_28, %c0_29] : memref<1x32xf32, #tpu.memory_space<vmem>>, vector<1x32xf32>
      %56 = vector.broadcast %55 : vector<1x32xf32> to vector<8x32xf32>
      %57 = arith.mulf %54, %56 : vector<8x32xf32>
      %c0_30 = arith.constant 0 : index
      %c0_31 = arith.constant 0 : index
      %58 = vector.load %arg7[%c0_30, %c0_31] : memref<1x32xf32, #tpu.memory_space<vmem>>, vector<1x32xf32>
      %59 = vector.broadcast %58 : vector<1x32xf32> to vector<8x32xf32>
      %60 = arith.addf %57, %59 : vector<8x32xf32>
      %c0_32 = arith.constant 0 : index
      %c0_33 = arith.constant 0 : index
      %61 = vector.load %arg8[%c0_32, %c0_33] : memref<32x32xbf16, #tpu.memory_space<vmem>>, vector<32x32xbf16>
      %62 = arith.extf %61 : vector<32x32xbf16> to vector<32x32xf32>
      %cst_34 = arith.constant dense<0.000000e+00> : vector<8x32xf32>
      %63 = tpu.matmul %60, %62, %cst_34 {dimension_numbers = #tpu.dot_dimension_numbers<[1], [0], [0], [1], [0, 0, 1, 1], [], []>} : vector<8x32xf32>, vector<32x32xf32>, vector<8x32xf32> -> vector<8x32xf32>
      %c0_35 = arith.constant 0 : index
      %c0_36 = arith.constant 0 : index
      %64 = vector.load %arg9[%c0_35, %c0_36] : memref<1x32xf32, #tpu.memory_space<vmem>>, vector<1x32xf32>
      %65 = vector.broadcast %64 : vector<1x32xf32> to vector<8x32xf32>
      %66 = arith.addf %63, %65 : vector<8x32xf32>
      %67 = arith.addf %66, %60 : vector<8x32xf32>
      %68 = arith.negf %67 : vector<8x32xf32>
      %69 = math.exp %68 : vector<8x32xf32>
      %cst_37 = arith.constant 1.000000e+00 : f32
      %70 = vector.broadcast %cst_37 : f32 to vector<8x32xf32>
      %71 = arith.addf %70, %69 : vector<8x32xf32>
      %72 = arith.divf %70, %71 : vector<8x32xf32>
      %73 = arith.mulf %67, %72 : vector<8x32xf32>
      %cst_38 = arith.constant dense<0.000000e+00> : vector<8xf32>
      %74 = vector.multi_reduction <add>, %73, %cst_38 [1] : vector<8x32xf32> to vector<8xf32>
      %75 = vector.shape_cast %74 : vector<8xf32> to vector<8x1xf32>
      %cst_39 = arith.constant 3.200000e+01 : f32
      %76 = vector.broadcast %cst_39 : f32 to vector<8x1xf32>
      %77 = arith.divf %75, %76 : vector<8x1xf32>
      %78 = vector.broadcast %77 : vector<8x1xf32> to vector<8x32xf32>
      %79 = arith.subf %73, %78 : vector<8x32xf32>
      %80 = vector.broadcast %77 : vector<8x1xf32> to vector<8x32xf32>
      %81 = arith.subf %73, %80 : vector<8x32xf32>
      %82 = arith.mulf %79, %81 : vector<8x32xf32>
      %cst_40 = arith.constant dense<0.000000e+00> : vector<8xf32>
      %83 = vector.multi_reduction <add>, %82, %cst_40 [1] : vector<8x32xf32> to vector<8xf32>
      %84 = vector.shape_cast %83 : vector<8xf32> to vector<8x1xf32>
      %cst_41 = arith.constant 3.200000e+01 : f32
      %85 = vector.broadcast %cst_41 : f32 to vector<8x1xf32>
      %86 = arith.divf %84, %85 : vector<8x1xf32>
      %87 = vector.broadcast %77 : vector<8x1xf32> to vector<8x32xf32>
      %88 = arith.subf %73, %87 : vector<8x32xf32>
      %cst_42 = arith.constant 1.000000e-01 : f32
      %89 = vector.broadcast %cst_42 : f32 to vector<8x1xf32>
      %90 = arith.addf %86, %89 : vector<8x1xf32>
      %91 = math.rsqrt %90 : vector<8x1xf32>
      %92 = vector.broadcast %91 : vector<8x1xf32> to vector<8x32xf32>
      %93 = arith.mulf %88, %92 : vector<8x32xf32>
      %c0_43 = arith.constant 0 : index
      %c0_44 = arith.constant 0 : index
      %94 = vector.load %arg10[%c0_43, %c0_44] : memref<1x32xf32, #tpu.memory_space<vmem>>, vector<1x32xf32>
      %95 = vector.broadcast %94 : vector<1x32xf32> to vector<8x32xf32>
      %96 = arith.mulf %93, %95 : vector<8x32xf32>
      %c0_45 = arith.constant 0 : index
      %c0_46 = arith.constant 0 : index
      %97 = vector.load %arg11[%c0_45, %c0_46] : memref<1x32xf32, #tpu.memory_space<vmem>>, vector<1x32xf32>
      %98 = vector.broadcast %97 : vector<1x32xf32> to vector<8x32xf32>
      %99 = arith.addf %96, %98 : vector<8x32xf32>
      %100 = arith.addf %60, %99 : vector<8x32xf32>
      %c0_47 = arith.constant 0 : index
      %c0_48 = arith.constant 0 : index
      %101 = vector.load %arg12[%c0_47, %c0_48] : memref<32x32xbf16, #tpu.memory_space<vmem>>, vector<32x32xbf16>
      %102 = arith.extf %101 : vector<32x32xbf16> to vector<32x32xf32>
      %cst_49 = arith.constant dense<0.000000e+00> : vector<8x32xf32>
      %103 = tpu.matmul %99, %102, %cst_49 {dimension_numbers = #tpu.dot_dimension_numbers<[1], [0], [0], [1], [0, 0, 1, 1], [], []>} : vector<8x32xf32>, vector<32x32xf32>, vector<8x32xf32> -> vector<8x32xf32>
      %c0_50 = arith.constant 0 : index
      %c0_51 = arith.constant 0 : index
      %104 = vector.load %arg13[%c0_50, %c0_51] : memref<1x32xf32, #tpu.memory_space<vmem>>, vector<1x32xf32>
      %105 = vector.broadcast %104 : vector<1x32xf32> to vector<8x32xf32>
      %106 = arith.addf %103, %105 : vector<8x32xf32>
      %107 = arith.addf %106, %100 : vector<8x32xf32>
      %108 = arith.negf %107 : vector<8x32xf32>
      %109 = math.exp %108 : vector<8x32xf32>
      %cst_52 = arith.constant 1.000000e+00 : f32
      %110 = vector.broadcast %cst_52 : f32 to vector<8x32xf32>
      %111 = arith.addf %110, %109 : vector<8x32xf32>
      %112 = arith.divf %110, %111 : vector<8x32xf32>
      %113 = arith.mulf %107, %112 : vector<8x32xf32>
      %cst_53 = arith.constant dense<0.000000e+00> : vector<8xf32>
      %114 = vector.multi_reduction <add>, %113, %cst_53 [1] : vector<8x32xf32> to vector<8xf32>
      %115 = vector.shape_cast %114 : vector<8xf32> to vector<8x1xf32>
      %cst_54 = arith.constant 3.200000e+01 : f32
      %116 = vector.broadcast %cst_54 : f32 to vector<8x1xf32>
      %117 = arith.divf %115, %116 : vector<8x1xf32>
      %118 = vector.broadcast %117 : vector<8x1xf32> to vector<8x32xf32>
      %119 = arith.subf %113, %118 : vector<8x32xf32>
      %120 = vector.broadcast %117 : vector<8x1xf32> to vector<8x32xf32>
      %121 = arith.subf %113, %120 : vector<8x32xf32>
      %122 = arith.mulf %119, %121 : vector<8x32xf32>
      %cst_55 = arith.constant dense<0.000000e+00> : vector<8xf32>
      %123 = vector.multi_reduction <add>, %122, %cst_55 [1] : vector<8x32xf32> to vector<8xf32>
      %124 = vector.shape_cast %123 : vector<8xf32> to vector<8x1xf32>
      %cst_56 = arith.constant 3.200000e+01 : f32
      %125 = vector.broadcast %cst_56 : f32 to vector<8x1xf32>
      %126 = arith.divf %124, %125 : vector<8x1xf32>
      %127 = vector.broadcast %117 : vector<8x1xf32> to vector<8x32xf32>
      %128 = arith.subf %113, %127 : vector<8x32xf32>
      %cst_57 = arith.constant 1.000000e-01 : f32
      %129 = vector.broadcast %cst_57 : f32 to vector<8x1xf32>
      %130 = arith.addf %126, %129 : vector<8x1xf32>
      %131 = math.rsqrt %130 : vector<8x1xf32>
      %132 = vector.broadcast %131 : vector<8x1xf32> to vector<8x32xf32>
      %133 = arith.mulf %128, %132 : vector<8x32xf32>
      %c0_58 = arith.constant 0 : index
      %c0_59 = arith.constant 0 : index
      %134 = vector.load %arg14[%c0_58, %c0_59] : memref<1x32xf32, #tpu.memory_space<vmem>>, vector<1x32xf32>
      %135 = vector.broadcast %134 : vector<1x32xf32> to vector<8x32xf32>
      %136 = arith.mulf %133, %135 : vector<8x32xf32>
      %c0_60 = arith.constant 0 : index
      %c0_61 = arith.constant 0 : index
      %137 = vector.load %arg15[%c0_60, %c0_61] : memref<1x32xf32, #tpu.memory_space<vmem>>, vector<1x32xf32>
      %138 = vector.broadcast %137 : vector<1x32xf32> to vector<8x32xf32>
      %139 = arith.addf %136, %138 : vector<8x32xf32>
      %140 = arith.addf %100, %139 : vector<8x32xf32>
      %c0_62 = arith.constant 0 : index
      %c0_63 = arith.constant 0 : index
      %141 = vector.load %arg16[%c0_62, %c0_63] : memref<32x32xbf16, #tpu.memory_space<vmem>>, vector<32x32xbf16>
      %142 = arith.extf %141 : vector<32x32xbf16> to vector<32x32xf32>
      %cst_64 = arith.constant dense<0.000000e+00> : vector<8x32xf32>
      %143 = tpu.matmul %139, %142, %cst_64 {dimension_numbers = #tpu.dot_dimension_numbers<[1], [0], [0], [1], [0, 0, 1, 1], [], []>} : vector<8x32xf32>, vector<32x32xf32>, vector<8x32xf32> -> vector<8x32xf32>
      %c0_65 = arith.constant 0 : index
      %c0_66 = arith.constant 0 : index
      %144 = vector.load %arg17[%c0_65, %c0_66] : memref<1x32xf32, #tpu.memory_space<vmem>>, vector<1x32xf32>
      %145 = vector.broadcast %144 : vector<1x32xf32> to vector<8x32xf32>
      %146 = arith.addf %143, %145 : vector<8x32xf32>
      %147 = arith.addf %146, %140 : vector<8x32xf32>
      %148 = arith.negf %147 : vector<8x32xf32>
      %149 = math.exp %148 : vector<8x32xf32>
      %cst_67 = arith.constant 1.000000e+00 : f32
      %150 = vector.broadcast %cst_67 : f32 to vector<8x32xf32>
      %151 = arith.addf %150, %149 : vector<8x32xf32>
      %152 = arith.divf %150, %151 : vector<8x32xf32>
      %153 = arith.mulf %147, %152 : vector<8x32xf32>
      %cst_68 = arith.constant dense<0.000000e+00> : vector<8xf32>
      %154 = vector.multi_reduction <add>, %153, %cst_68 [1] : vector<8x32xf32> to vector<8xf32>
      %155 = vector.shape_cast %154 : vector<8xf32> to vector<8x1xf32>
      %cst_69 = arith.constant 3.200000e+01 : f32
      %156 = vector.broadcast %cst_69 : f32 to vector<8x1xf32>
      %157 = arith.divf %155, %156 : vector<8x1xf32>
      %158 = vector.broadcast %157 : vector<8x1xf32> to vector<8x32xf32>
      %159 = arith.subf %153, %158 : vector<8x32xf32>
      %160 = vector.broadcast %157 : vector<8x1xf32> to vector<8x32xf32>
      %161 = arith.subf %153, %160 : vector<8x32xf32>
      %162 = arith.mulf %159, %161 : vector<8x32xf32>
      %cst_70 = arith.constant dense<0.000000e+00> : vector<8xf32>
      %163 = vector.multi_reduction <add>, %162, %cst_70 [1] : vector<8x32xf32> to vector<8xf32>
      %164 = vector.shape_cast %163 : vector<8xf32> to vector<8x1xf32>
      %cst_71 = arith.constant 3.200000e+01 : f32
      %165 = vector.broadcast %cst_71 : f32 to vector<8x1xf32>
      %166 = arith.divf %164, %165 : vector<8x1xf32>
      %167 = vector.broadcast %157 : vector<8x1xf32> to vector<8x32xf32>
      %168 = arith.subf %153, %167 : vector<8x32xf32>
      %cst_72 = arith.constant 1.000000e-01 : f32
      %169 = vector.broadcast %cst_72 : f32 to vector<8x1xf32>
      %170 = arith.addf %166, %169 : vector<8x1xf32>
      %171 = math.rsqrt %170 : vector<8x1xf32>
      %172 = vector.broadcast %171 : vector<8x1xf32> to vector<8x32xf32>
      %173 = arith.mulf %168, %172 : vector<8x32xf32>
      %c0_73 = arith.constant 0 : index
      %c0_74 = arith.constant 0 : index
      %174 = vector.load %arg18[%c0_73, %c0_74] : memref<1x32xf32, #tpu.memory_space<vmem>>, vector<1x32xf32>
      %175 = vector.broadcast %174 : vector<1x32xf32> to vector<8x32xf32>
      %176 = arith.mulf %173, %175 : vector<8x32xf32>
      %c0_75 = arith.constant 0 : index
      %c0_76 = arith.constant 0 : index
      %177 = vector.load %arg19[%c0_75, %c0_76] : memref<1x32xf32, #tpu.memory_space<vmem>>, vector<1x32xf32>
      %178 = vector.broadcast %177 : vector<1x32xf32> to vector<8x32xf32>
      %179 = arith.addf %176, %178 : vector<8x32xf32>
      %180 = arith.addf %140, %179 : vector<8x32xf32>
      %c0_77 = arith.constant 0 : index
      %c0_78 = arith.constant 0 : index
      %181 = vector.load %arg20[%c0_77, %c0_78] : memref<32x32xbf16, #tpu.memory_space<vmem>>, vector<32x32xbf16>
      %182 = arith.extf %181 : vector<32x32xbf16> to vector<32x32xf32>
      %cst_79 = arith.constant dense<0.000000e+00> : vector<8x32xf32>
      %183 = tpu.matmul %179, %182, %cst_79 {dimension_numbers = #tpu.dot_dimension_numbers<[1], [0], [0], [1], [0, 0, 1, 1], [], []>} : vector<8x32xf32>, vector<32x32xf32>, vector<8x32xf32> -> vector<8x32xf32>
      %c0_80 = arith.constant 0 : index
      %c0_81 = arith.constant 0 : index
      %184 = vector.load %arg21[%c0_80, %c0_81] : memref<1x32xf32, #tpu.memory_space<vmem>>, vector<1x32xf32>
      %185 = vector.broadcast %184 : vector<1x32xf32> to vector<8x32xf32>
      %186 = arith.addf %183, %185 : vector<8x32xf32>
      %187 = arith.addf %186, %180 : vector<8x32xf32>
      %188 = arith.negf %187 : vector<8x32xf32>
      %189 = math.exp %188 : vector<8x32xf32>
      %cst_82 = arith.constant 1.000000e+00 : f32
      %190 = vector.broadcast %cst_82 : f32 to vector<8x32xf32>
      %191 = arith.addf %190, %189 : vector<8x32xf32>
      %192 = arith.divf %190, %191 : vector<8x32xf32>
      %193 = arith.mulf %187, %192 : vector<8x32xf32>
      %cst_83 = arith.constant dense<0.000000e+00> : vector<8xf32>
      %194 = vector.multi_reduction <add>, %193, %cst_83 [1] : vector<8x32xf32> to vector<8xf32>
      %195 = vector.shape_cast %194 : vector<8xf32> to vector<8x1xf32>
      %cst_84 = arith.constant 3.200000e+01 : f32
      %196 = vector.broadcast %cst_84 : f32 to vector<8x1xf32>
      %197 = arith.divf %195, %196 : vector<8x1xf32>
      %198 = vector.broadcast %197 : vector<8x1xf32> to vector<8x32xf32>
      %199 = arith.subf %193, %198 : vector<8x32xf32>
      %200 = vector.broadcast %197 : vector<8x1xf32> to vector<8x32xf32>
      %201 = arith.subf %193, %200 : vector<8x32xf32>
      %202 = arith.mulf %199, %201 : vector<8x32xf32>
      %cst_85 = arith.constant dense<0.000000e+00> : vector<8xf32>
      %203 = vector.multi_reduction <add>, %202, %cst_85 [1] : vector<8x32xf32> to vector<8xf32>
      %204 = vector.shape_cast %203 : vector<8xf32> to vector<8x1xf32>
      %cst_86 = arith.constant 3.200000e+01 : f32
      %205 = vector.broadcast %cst_86 : f32 to vector<8x1xf32>
      %206 = arith.divf %204, %205 : vector<8x1xf32>
      %207 = vector.broadcast %197 : vector<8x1xf32> to vector<8x32xf32>
      %208 = arith.subf %193, %207 : vector<8x32xf32>
      %cst_87 = arith.constant 1.000000e-01 : f32
      %209 = vector.broadcast %cst_87 : f32 to vector<8x1xf32>
      %210 = arith.addf %206, %209 : vector<8x1xf32>
      %211 = math.rsqrt %210 : vector<8x1xf32>
      %212 = vector.broadcast %211 : vector<8x1xf32> to vector<8x32xf32>
      %213 = arith.mulf %208, %212 : vector<8x32xf32>
      %c0_88 = arith.constant 0 : index
      %c0_89 = arith.constant 0 : index
      %214 = vector.load %arg22[%c0_88, %c0_89] : memref<1x32xf32, #tpu.memory_space<vmem>>, vector<1x32xf32>
      %215 = vector.broadcast %214 : vector<1x32xf32> to vector<8x32xf32>
      %216 = arith.mulf %213, %215 : vector<8x32xf32>
      %c0_90 = arith.constant 0 : index
      %c0_91 = arith.constant 0 : index
      %217 = vector.load %arg23[%c0_90, %c0_91] : memref<1x32xf32, #tpu.memory_space<vmem>>, vector<1x32xf32>
      %218 = vector.broadcast %217 : vector<1x32xf32> to vector<8x32xf32>
      %219 = arith.addf %216, %218 : vector<8x32xf32>
      %c0_92 = arith.constant 0 : index
      %c0_93 = arith.constant 0 : index
      %220 = vector.load %arg24[%c0_92, %c0_93] : memref<32x256xbf16, #tpu.memory_space<vmem>>, vector<32x256xbf16>
      %221 = arith.extf %220 : vector<32x256xbf16> to vector<32x256xf32>
      %cst_94 = arith.constant dense<0.000000e+00> : vector<8x256xf32>
      %222 = tpu.matmul %219, %221, %cst_94 {dimension_numbers = #tpu.dot_dimension_numbers<[1], [0], [0], [1], [0, 0, 1, 1], [], []>} : vector<8x32xf32>, vector<32x256xf32>, vector<8x256xf32> -> vector<8x256xf32>
      %c0_95 = arith.constant 0 : index
      %c0_96 = arith.constant 0 : index
      %223 = vector.load %arg25[%c0_95, %c0_96] : memref<1x256xf32, #tpu.memory_space<vmem>>, vector<1x256xf32>
      %224 = vector.broadcast %223 : vector<1x256xf32> to vector<8x256xf32>
      %225 = arith.addf %222, %224 : vector<8x256xf32>
      %226 = vector.extract_strided_slice %225 {offsets = [0, 0], sizes = [8, 128], strides = [1, 1]} : vector<8x256xf32> to vector<8x128xf32>
      %227 = vector.extract_strided_slice %225 {offsets = [0, 128], sizes = [8, 128], strides = [1, 1]} : vector<8x256xf32> to vector<8x128xf32>
      %c0_97 = arith.constant 0 : index
      %c0_98 = arith.constant 0 : index
      %228 = vector.load %arg3[%c0_97, %c0_98] : memref<8x128xf32, #tpu.memory_space<vmem>>, vector<8x128xf32>
      %229 = arith.mulf %228, %228 : vector<8x128xf32>
      %cst_99 = arith.constant 5.000000e-01 : f32
      %230 = vector.broadcast %cst_99 : f32 to vector<8x128xf32>
      %231 = arith.mulf %230, %229 : vector<8x128xf32>
      %cst_100 = arith.constant -2.81605864 : f32
      %232 = vector.broadcast %cst_100 : f32 to vector<8x128xf32>
      %233 = arith.subf %232, %231 : vector<8x128xf32>
      %234 = arith.subf %228, %226 : vector<8x128xf32>
      %235 = arith.mulf %234, %234 : vector<8x128xf32>
      %cst_101 = arith.constant 0.000000e+00 : f32
      %236 = vector.broadcast %cst_101 : f32 to vector<8x128xf32>
      %237 = arith.subf %236, %227 : vector<8x128xf32>
      %238 = math.exp %237 : vector<8x128xf32>
      %239 = arith.mulf %235, %238 : vector<8x128xf32>
      %240 = arith.addf %227, %239 : vector<8x128xf32>
      %cst_102 = arith.constant 5.000000e-01 : f32
      %241 = vector.broadcast %cst_102 : f32 to vector<8x128xf32>
      %242 = arith.mulf %241, %240 : vector<8x128xf32>
      %cst_103 = arith.constant -1.20662057 : f32
      %243 = vector.broadcast %cst_103 : f32 to vector<8x128xf32>
      %244 = arith.subf %243, %242 : vector<8x128xf32>
      %cst_104 = arith.constant 2.26999655E-5 : f32
      %245 = vector.broadcast %cst_104 : f32 to vector<8x128xf32>
      %246 = arith.mulf %245, %229 : vector<8x128xf32>
      %cst_105 = arith.constant -8.22152328 : f32
      %247 = vector.broadcast %cst_105 : f32 to vector<8x128xf32>
      %248 = arith.subf %247, %246 : vector<8x128xf32>
      %249 = arith.maximumf %233, %244 : vector<8x128xf32>
      %250 = arith.maximumf %249, %248 : vector<8x128xf32>
      %251 = arith.subf %233, %250 : vector<8x128xf32>
      %252 = math.exp %251 : vector<8x128xf32>
      %253 = arith.subf %244, %250 : vector<8x128xf32>
      %254 = math.exp %253 : vector<8x128xf32>
      %255 = arith.addf %252, %254 : vector<8x128xf32>
      %256 = arith.subf %248, %250 : vector<8x128xf32>
      %257 = math.exp %256 : vector<8x128xf32>
      %258 = arith.addf %255, %257 : vector<8x128xf32>
      %259 = math.log %258 : vector<8x128xf32>
      %260 = arith.addf %250, %259 : vector<8x128xf32>
      %c0_106 = arith.constant 0 : index
      %c0_107 = arith.constant 0 : index
      %261 = vector.load %arg26[%c0_106, %c0_107] : memref<8x128xf32, #tpu.memory_space<vmem>>, vector<8x128xf32>
      tpu.vector_store %arg26[%c0_106, %c0_107], %260 {strides = array<i32>} : memref<8x128xf32, #tpu.memory_space<vmem>>, vector<8x128xf32>,
    } else {
    }
    return
  }
  func.func @transform_0(%arg0: i32, %arg1: i32) -> (i32, i32) {
    %c0_i32 = arith.constant 0 : i32
    return %arg0, %arg1 : i32, i32
  }
  func.func @transform_1(%arg0: i32, %arg1: i32) -> (i32, i32) {
    %c0_i32 = arith.constant 0 : i32
    %c0_i32_0 = arith.constant 0 : i32
    return %arg0, %c0_i32 : i32, i32
  }
  func.func @transform_2(%arg0: i32, %arg1: i32) -> (i32, i32) {
    %c0_i32 = arith.constant 0 : i32
    %c0_i32_0 = arith.constant 0 : i32
    return %arg1, %c0_i32 : i32, i32
  }
  func.func @transform_3(%arg0: i32, %arg1: i32) -> (i32, i32) {
    %c0_i32 = arith.constant 0 : i32
    %c0_i32_0 = arith.constant 0 : i32
    %c0_i32_1 = arith.constant 0 : i32
    return %c0_i32, %c0_i32_0 : i32, i32
  }
  func.func @transform_4(%arg0: i32, %arg1: i32) -> (i32, i32) {
    %c0_i32 = arith.constant 0 : i32
    %c0_i32_0 = arith.constant 0 : i32
    %c0_i32_1 = arith.constant 0 : i32
    return %c0_i32, %c0_i32_0 : i32, i32
  }
  func.func @transform_5(%arg0: i32, %arg1: i32) -> (i32, i32) {
    %c0_i32 = arith.constant 0 : i32
    %c0_i32_0 = arith.constant 0 : i32
    %c0_i32_1 = arith.constant 0 : i32
    return %c0_i32, %c0_i32_0 : i32, i32
  }
  func.func @transform_6(%arg0: i32, %arg1: i32) -> (i32, i32) {
    %c0_i32 = arith.constant 0 : i32
    %c0_i32_0 = arith.constant 0 : i32
    %c0_i32_1 = arith.constant 0 : i32
    return %c0_i32, %c0_i32_0 : i32, i32
  }
  func.func @transform_7(%arg0: i32, %arg1: i32) -> (i32, i32) {
    %c0_i32 = arith.constant 0 : i32
    %c0_i32_0 = arith.constant 0 : i32
    %c0_i32_1 = arith.constant 0 : i32
    return %c0_i32, %c0_i32_0 : i32, i32
  }
  func.func @transform_8(%arg0: i32, %arg1: i32) -> (i32, i32) {
    %c0_i32 = arith.constant 0 : i32
    %c0_i32_0 = arith.constant 0 : i32
    %c0_i32_1 = arith.constant 0 : i32
    return %c0_i32, %c0_i32_0 : i32, i32
  }
  func.func @transform_9(%arg0: i32, %arg1: i32) -> (i32, i32) {
    %c0_i32 = arith.constant 0 : i32
    %c0_i32_0 = arith.constant 0 : i32
    %c0_i32_1 = arith.constant 0 : i32
    return %c0_i32, %c0_i32_0 : i32, i32
  }
  func.func @transform_10(%arg0: i32, %arg1: i32) -> (i32, i32) {
    %c0_i32 = arith.constant 0 : i32
    %c0_i32_0 = arith.constant 0 : i32
    %c0_i32_1 = arith.constant 0 : i32
    return %c0_i32, %c0_i32_0 : i32, i32
  }
  func.func @transform_11(%arg0: i32, %arg1: i32) -> (i32, i32) {
    %c0_i32 = arith.constant 0 : i32
    %c0_i32_0 = arith.constant 0 : i32
    %c0_i32_1 = arith.constant 0 : i32
    return %c0_i32, %c0_i32_0 : i32, i32
  }
  func.func @transform_12(%arg0: i32, %arg1: i32) -> (i32, i32) {
    %c0_i32 = arith.constant 0 : i32
    %c0_i32_0 = arith.constant 0 : i32
    %c0_i32_1 = arith.constant 0 : i32
    return %c0_i32, %c0_i32_0 : i32, i32
  }
  func.func @transform_13(%arg0: i32, %arg1: i32) -> (i32, i32) {
    %c0_i32 = arith.constant 0 : i32
    %c0_i32_0 = arith.constant 0 : i32
    %c0_i32_1 = arith.constant 0 : i32
    return %c0_i32, %c0_i32_0 : i32, i32
  }
  func.func @transform_14(%arg0: i32, %arg1: i32) -> (i32, i32) {
    %c0_i32 = arith.constant 0 : i32
    %c0_i32_0 = arith.constant 0 : i32
    %c0_i32_1 = arith.constant 0 : i32
    return %c0_i32, %c0_i32_0 : i32, i32
  }
  func.func @transform_15(%arg0: i32, %arg1: i32) -> (i32, i32) {
    %c0_i32 = arith.constant 0 : i32
    %c0_i32_0 = arith.constant 0 : i32
    %c0_i32_1 = arith.constant 0 : i32
    return %c0_i32, %c0_i32_0 : i32, i32
  }
  func.func @transform_16(%arg0: i32, %arg1: i32) -> (i32, i32) {
    %c0_i32 = arith.constant 0 : i32
    %c0_i32_0 = arith.constant 0 : i32
    %c0_i32_1 = arith.constant 0 : i32
    return %c0_i32, %c0_i32_0 : i32, i32
  }
  func.func @transform_17(%arg0: i32, %arg1: i32) -> (i32, i32) {
    %c0_i32 = arith.constant 0 : i32
    %c0_i32_0 = arith.constant 0 : i32
    %c0_i32_1 = arith.constant 0 : i32
    return %c0_i32, %c0_i32_0 : i32, i32
  }
  func.func @transform_18(%arg0: i32, %arg1: i32) -> (i32, i32) {
    %c0_i32 = arith.constant 0 : i32
    %c0_i32_0 = arith.constant 0 : i32
    %c0_i32_1 = arith.constant 0 : i32
    return %c0_i32, %c0_i32_0 : i32, i32
  }
  func.func @transform_19(%arg0: i32, %arg1: i32) -> (i32, i32) {
    %c0_i32 = arith.constant 0 : i32
    %c0_i32_0 = arith.constant 0 : i32
    %c0_i32_1 = arith.constant 0 : i32
    return %c0_i32, %c0_i32_0 : i32, i32
  }
  func.func @transform_20(%arg0: i32, %arg1: i32) -> (i32, i32) {
    %c0_i32 = arith.constant 0 : i32
    %c0_i32_0 = arith.constant 0 : i32
    %c0_i32_1 = arith.constant 0 : i32
    return %c0_i32, %c0_i32_0 : i32, i32
  }
  func.func @transform_21(%arg0: i32, %arg1: i32) -> (i32, i32) {
    %c0_i32 = arith.constant 0 : i32
    %c0_i32_0 = arith.constant 0 : i32
    %c0_i32_1 = arith.constant 0 : i32
    return %c0_i32, %c0_i32_0 : i32, i32
  }
  func.func @transform_22(%arg0: i32, %arg1: i32) -> (i32, i32) {
    %c0_i32 = arith.constant 0 : i32
    %c0_i32_0 = arith.constant 0 : i32
    %c0_i32_1 = arith.constant 0 : i32
    return %c0_i32, %c0_i32_0 : i32, i32
  }
  func.func @transform_23(%arg0: i32, %arg1: i32) -> (i32, i32) {
    %c0_i32 = arith.constant 0 : i32
    %c0_i32_0 = arith.constant 0 : i32
    %c0_i32_1 = arith.constant 0 : i32
    return %c0_i32, %c0_i32_0 : i32, i32
  }
  func.func @transform_24(%arg0: i32, %arg1: i32) -> (i32, i32) {
    %c0_i32 = arith.constant 0 : i32
    %c0_i32_0 = arith.constant 0 : i32
    return %arg0, %c0_i32 : i32, i32
  }
}

</mosaic_0001>

<llo_original>
// kernel: tpu_custom_call.1
$region0: #{tpu_custom_call.1}
  #allocation0 [shape = 'u32[]', space=smem, size = 0x4, offset = 0x4, fixed_abs, tag = 'smem constant byte address 0x4 - core index']
  #allocation1 [shape = 'u32[72,128]{1,0:T(1,128)}', space=vmem, size = 0x9000, scoped, tag = 'internal scratch']
  #allocation2 [shape = 'f32[8,32]{1,0:T(8,128)}', space=vmem, size = 0x1000, scoped, tag = 'scratch operand']
  #allocation3 [shape = 'f32[8,1]{1,0:T(8,128)}', space=vmem, size = 0x1000, scoped, tag = 'scratch operand']
  %s0 = inlined_call_operand.hbm [shape: f32[8,128], index: 0, kind: input, shape index: {}]
  %s1 = inlined_call_operand.hbm [shape: f32[8,128], index: 1, kind: input, shape index: {}]
  %s2 = inlined_call_operand.vmem [shape: bf16[128,32], index: 2, kind: input, shape index: {}]
  %s3 = inlined_call_operand.vmem [shape: f32[1,32], index: 3, kind: input, shape index: {}]
  %s4 = inlined_call_operand.hbm [shape: f32[1,32], index: 4, kind: input, shape index: {}]
  %s5 = inlined_call_operand.hbm [shape: f32[1,32], index: 5, kind: input, shape index: {}]
  %s6 = inlined_call_operand.vmem [shape: bf16[32,32], index: 6, kind: input, shape index: {}]
  %s7 = inlined_call_operand.hbm [shape: f32[1,32], index: 7, kind: input, shape index: {}]
  %s8 = inlined_call_operand.hbm [shape: f32[1,32], index: 8, kind: input, shape index: {}]
  %s9 = inlined_call_operand.hbm [shape: f32[1,32], index: 9, kind: input, shape index: {}]
  %s10 = inlined_call_operand.vmem [shape: bf16[32,32], index: 10, kind: input, shape index: {}]
  %s11 = inlined_call_operand.hbm [shape: f32[1,32], index: 11, kind: input, shape index: {}]
  %s12 = inlined_call_operand.hbm [shape: f32[1,32], index: 12, kind: input, shape index: {}]
  %s13 = inlined_call_operand.hbm [shape: f32[1,32], index: 13, kind: input, shape index: {}]
  %s14 = inlined_call_operand.vmem [shape: bf16[32,32], index: 14, kind: input, shape index: {}]
  %s15 = inlined_call_operand.hbm [shape: f32[1,32], index: 15, kind: input, shape index: {}]
  %s16 = inlined_call_operand.hbm [shape: f32[1,32], index: 16, kind: input, shape index: {}]
  %s17 = inlined_call_operand.hbm [shape: f32[1,32], index: 17, kind: input, shape index: {}]
  %s18 = inlined_call_operand.vmem [shape: bf16[32,32], index: 18, kind: input, shape index: {}]
  %s19 = inlined_call_operand.hbm [shape: f32[1,32], index: 19, kind: input, shape index: {}]
  %s20 = inlined_call_operand.hbm [shape: f32[1,32], index: 20, kind: input, shape index: {}]
  %s21 = inlined_call_operand.hbm [shape: f32[1,32], index: 21, kind: input, shape index: {}]
  %s22 = inlined_call_operand.vmem [shape: bf16[32,256], index: 22, kind: input, shape index: {}]
  %s23 = inlined_call_operand.vmem [shape: f32[1,256], index: 23, kind: input, shape index: {}]
  %s24 = inlined_call_operand.hbm [shape: f32[8,128], index: 24, kind: output, shape index: {}]
  %s25 = sld [smem:[#allocation0]]
  $region178: #{tpu_custom_call.1} parent=0
    _
  %s27 = ssub.s32 1, %s25
  %s28 = scalar_select 0, %s27, %s25
  $region1: #{tpu_custom_call.1} parent=0
    #allocation4 [shape = 'u8[4096]{0}', space=vmem, size = 0x1000, scoped, tag = 'input window, operand 0, single buffered']
    #allocation5 [shape = 's32[1]{0}', space=sflag, size = 0x4, scoped, tag = 'scoped memory for tpu_custom_call.1']
    #allocation6 [shape = 's32[1]{0}', space=sflag, size = 0x4, scoped, tag = 'scoped memory for tpu_custom_call.1']
    #allocation7 [shape = 'u8[4096]{0}', space=vmem, size = 0x1000, scoped, tag = 'input window, operand 1, single buffered']
    #allocation8 [shape = 's32[1]{0}', space=sflag, size = 0x4, scoped, tag = 'scoped memory for tpu_custom_call.1']
    #allocation9 [shape = 'u8[512]{0}', space=vmem, size = 0x400, scoped, tag = 'input window, operand 4, single buffered']
    #allocation10 [shape = 'u8[512]{0}', space=vmem, size = 0x400, scoped, tag = 'input window, operand 5, single buffered']
    #allocation11 [shape = 's32[1]{0}', space=sflag, size = 0x4, scoped, tag = 'scoped memory for tpu_custom_call.1']
    #allocation12 [shape = 'u8[512]{0}', space=vmem, size = 0x400, scoped, tag = 'input window, operand 7, single buffered']
    #allocation13 [shape = 'u8[512]{0}', space=vmem, size = 0x400, scoped, tag = 'input window, operand 8, single buffered']
    #allocation14 [shape = 's32[1]{0}', space=sflag, size = 0x4, scoped, tag = 'scoped memory for tpu_custom_call.1']
    #allocation15 [shape = 'u8[512]{0}', space=vmem, size = 0x400, scoped, tag = 'input window, operand 9, single buffered']
    #allocation16 [shape = 'u8[512]{0}', space=vmem, size = 0x400, scoped, tag = 'input window, operand 11, single buffered']
    #allocation17 [shape = 's32[1]{0}', space=sflag, size = 0x4, scoped, tag = 'scoped memory for tpu_custom_call.1']
    #allocation18 [shape = 'u8[512]{0}', space=vmem, size = 0x400, scoped, tag = 'input window, operand 12, single buffered']
    #allocation19 [shape = 'u8[512]{0}', space=vmem, size = 0x400, scoped, tag = 'input window, operand 13, single buffered']
    #allocation20 [shape = 's32[1]{0}', space=sflag, size = 0x4, scoped, tag = 'scoped memory for tpu_custom_call.1']
    #allocation21 [shape = 'u8[512]{0}', space=vmem, size = 0x400, scoped, tag = 'input window, operand 15, single buffered']
    #allocation22 [shape = 'u8[512]{0}', space=vmem, size = 0x400, scoped, tag = 'input window, operand 16, single buffered']
    #allocation23 [shape = 's32[1]{0}', space=sflag, size = 0x4, scoped, tag = 'scoped memory for tpu_custom_call.1']
    #allocation24 [shape = 'u8[512]{0}', space=vmem, size = 0x400, scoped, tag = 'input window, operand 17, single buffered']
    #allocation25 [shape = 'u8[512]{0}', space=vmem, size = 0x400, scoped, tag = 'input window, operand 19, single buffered']
    #allocation26 [shape = 's32[1]{0}', space=sflag, size = 0x4, scoped, tag = 'scoped memory for tpu_custom_call.1']
    #allocation27 [shape = 'u8[512]{0}', space=vmem, size = 0x400, scoped, tag = 'input window, operand 20, single buffered']
    #allocation28 [shape = 'u8[512]{0}', space=vmem, size = 0x400, scoped, tag = 'input window, operand 21, single buffered']
    #allocation29 [shape = 's32[1]{0}', space=sflag, size = 0x4, scoped, tag = 'scoped memory for tpu_custom_call.1']
    #allocation30 [shape = 'u8[4096]{0}', space=vmem, size = 0x1000, scoped, tag = 'output window, operand 0, single buffered']
    %29 = vsyncpa [#allocation5], 0
    %30 = vsyncpa [#allocation8], 0
    %31 = vsyncpa [#allocation11], 0
    %32 = vsyncpa [#allocation14], 0
    %33 = vsyncpa [#allocation17], 0
    %34 = vsyncpa [#allocation20], 0
    %35 = vsyncpa [#allocation23], 0
    %36 = vsyncpa [#allocation26], 0
    %37 = vsyncpa [#allocation29], 0
    %38 = vsyncpa [#allocation6], 0
    // Predicated region
    $region2: #{tpu_custom_call.1} parent=1 // pred_check
      _
    $region3: #{tpu_custom_call.1} parent=1 // pred_check_branch
      %40 = sbr.rel (0) target = $region5
    $region4: #{tpu_custom_call.1} parent=1 // pred_region
      %42 = vsyncadd [#allocation5], 0
      %s44 = sshll.u32 %s0, 4
      %s45 = int_to_ptr.hbm [resolvable:$true] %s44
      %s46 = sshll.u32 [#allocation4], 4
      %s47 = int_to_ptr.vmem [resolvable:$true] %s46
      %49 = dma.hbm_to_vmem [thread:$0]  %s45, 128, %s47, [#allocation5]
    $region5: #{tpu_custom_call.1} parent=1 // pred_fallthru
      _
    // Predicated region
    $region6: #{tpu_custom_call.1} parent=1 // pred_check
      _
    $region7: #{tpu_custom_call.1} parent=1 // pred_check_branch
      %51 = sbr.rel (0) target = $region9
    $region8: #{tpu_custom_call.1} parent=1 // pred_region
      %53 = vsyncadd [#allocation8], 0
      %s55 = sshll.u32 %s1, 4
      %s56 = int_to_ptr.hbm [resolvable:$true] %s55
      %s57 = sshll.u32 [#allocation7], 4
      %s58 = int_to_ptr.vmem [resolvable:$true] %s57
      %60 = dma.hbm_to_vmem [thread:$0]  %s56, 128, %s58, [#allocation8]
    $region9: #{tpu_custom_call.1} parent=1 // pred_fallthru
      _
    // Predicated region
    $region10: #{tpu_custom_call.1} parent=1 // pred_check
      _
    $region11: #{tpu_custom_call.1} parent=1 // pred_check_branch
      %62 = sbr.rel (0) target = $region13
    $region12: #{tpu_custom_call.1} parent=1 // pred_region
      _
    $region13: #{tpu_custom_call.1} parent=1 // pred_fallthru
      _
    // Predicated region
    $region14: #{tpu_custom_call.1} parent=1 // pred_check
      _
    $region15: #{tpu_custom_call.1} parent=1 // pred_check_branch
      %64 = sbr.rel (0) target = $region17
    $region16: #{tpu_custom_call.1} parent=1 // pred_region
      _
    $region17: #{tpu_custom_call.1} parent=1 // pred_fallthru
      _
    // Predicated region
    $region18: #{tpu_custom_call.1} parent=1 // pred_check
      _
    $region19: #{tpu_custom_call.1} parent=1 // pred_check_branch
      %66 = sbr.rel (0) target = $region21
    $region20: #{tpu_custom_call.1} parent=1 // pred_region
      %68 = vsyncadd [#allocation8], 0
      %s70 = sshll.u32 %s4, 4
      %s71 = int_to_ptr.hbm [resolvable:$true] %s70
      %s72 = sshll.u32 [#allocation9], 4
      %s73 = int_to_ptr.vmem [resolvable:$true] %s72
      %75 = dma.hbm_to_vmem [thread:$0]  %s71, 16, %s73, [#allocation8]
    $region21: #{tpu_custom_call.1} parent=1 // pred_fallthru
      _
    // Predicated region
    $region22: #{tpu_custom_call.1} parent=1 // pred_check
      _
    $region23: #{tpu_custom_call.1} parent=1 // pred_check_branch
      %77 = sbr.rel (0) target = $region25
    $region24: #{tpu_custom_call.1} parent=1 // pred_region
      %79 = vsyncadd [#allocation11], 0
      %s81 = sshll.u32 %s5, 4
      %s82 = int_to_ptr.hbm [resolvable:$true] %s81
      %s83 = sshll.u32 [#allocation10], 4
      %s84 = int_to_ptr.vmem [resolvable:$true] %s83
      %86 = dma.hbm_to_vmem [thread:$0]  %s82, 16, %s84, [#allocation11]
    $region25: #{tpu_custom_call.1} parent=1 // pred_fallthru
      _
    // Predicated region
    $region26: #{tpu_custom_call.1} parent=1 // pred_check
      _
    $region27: #{tpu_custom_call.1} parent=1 // pred_check_branch
      %88 = sbr.rel (0) target = $region29
    $region28: #{tpu_custom_call.1} parent=1 // pred_region
      _
    $region29: #{tpu_custom_call.1} parent=1 // pred_fallthru
      _
    // Predicated region
    $region30: #{tpu_custom_call.1} parent=1 // pred_check
      _
    $region31: #{tpu_custom_call.1} parent=1 // pred_check_branch
      %90 = sbr.rel (0) target = $region33
    $region32: #{tpu_custom_call.1} parent=1 // pred_region
      %92 = vsyncadd [#allocation11], 0
      %s94 = sshll.u32 %s7, 4
      %s95 = int_to_ptr.hbm [resolvable:$true] %s94
      %s96 = sshll.u32 [#allocation12], 4
      %s97 = int_to_ptr.vmem [resolvable:$true] %s96
      %99 = dma.hbm_to_vmem [thread:$0]  %s95, 16, %s97, [#allocation11]
    $region33: #{tpu_custom_call.1} parent=1 // pred_fallthru
      _
    // Predicated region
    $region34: #{tpu_custom_call.1} parent=1 // pred_check
      _
    $region35: #{tpu_custom_call.1} parent=1 // pred_check_branch
      %101 = sbr.rel (0) target = $region37
    $region36: #{tpu_custom_call.1} parent=1 // pred_region
      %103 = vsyncadd [#allocation14], 0
      %s105 = sshll.u32 %s8, 4
      %s106 = int_to_ptr.hbm [resolvable:$true] %s105
      %s107 = sshll.u32 [#allocation13], 4
      %s108 = int_to_ptr.vmem [resolvable:$true] %s107
      %110 = dma.hbm_to_vmem [thread:$0]  %s106, 16, %s108, [#allocation14]
    $region37: #{tpu_custom_call.1} parent=1 // pred_fallthru
      _
    // Predicated region
    $region38: #{tpu_custom_call.1} parent=1 // pred_check
      _
    $region39: #{tpu_custom_call.1} parent=1 // pred_check_branch
      %112 = sbr.rel (0) target = $region41
    $region40: #{tpu_custom_call.1} parent=1 // pred_region
      %114 = vsyncadd [#allocation14], 0
      %s116 = sshll.u32 %s9, 4
      %s117 = int_to_ptr.hbm [resolvable:$true] %s116
      %s118 = sshll.u32 [#allocation15], 4
      %s119 = int_to_ptr.vmem [resolvable:$true] %s118
      %121 = dma.hbm_to_vmem [thread:$0]  %s117, 16, %s119, [#allocation14]
    $region41: #{tpu_custom_call.1} parent=1 // pred_fallthru
      _
    // Predicated region
    $region42: #{tpu_custom_call.1} parent=1 // pred_check
      _
    $region43: #{tpu_custom_call.1} parent=1 // pred_check_branch
      %123 = sbr.rel (0) target = $region45
    $region44: #{tpu_custom_call.1} parent=1 // pred_region
      _
    $region45: #{tpu_custom_call.1} parent=1 // pred_fallthru
      _
    // Predicated region
    $region46: #{tpu_custom_call.1} parent=1 // pred_check
      _
    $region47: #{tpu_custom_call.1} parent=1 // pred_check_branch
      %125 = sbr.rel (0) target = $region49
    $region48: #{tpu_custom_call.1} parent=1 // pred_region
      %127 = vsyncadd [#allocation17], 0
      %s129 = sshll.u32 %s11, 4
      %s130 = int_to_ptr.hbm [resolvable:$true] %s129
      %s131 = sshll.u32 [#allocation16], 4
      %s132 = int_to_ptr.vmem [resolvable:$true] %s131
      %134 = dma.hbm_to_vmem [thread:$0]  %s130, 16, %s132, [#allocation17]
    $region49: #{tpu_custom_call.1} parent=1 // pred_fallthru
      _
    // Predicated region
    $region50: #{tpu_custom_call.1} parent=1 // pred_check
      _
    $region51: #{tpu_custom_call.1} parent=1 // pred_check_branch
      %136 = sbr.rel (0) target = $region53
    $region52: #{tpu_custom_call.1} parent=1 // pred_region
      %138 = vsyncadd [#allocation17], 0
      %s140 = sshll.u32 %s12, 4
      %s141 = int_to_ptr.hbm [resolvable:$true] %s140
      %s142 = sshll.u32 [#allocation18], 4
      %s143 = int_to_ptr.vmem [resolvable:$true] %s142
      %145 = dma.hbm_to_vmem [thread:$0]  %s141, 16, %s143, [#allocation17]
    $region53: #{tpu_custom_call.1} parent=1 // pred_fallthru
      _
    // Predicated region
    $region54: #{tpu_custom_call.1} parent=1 // pred_check
      _
    $region55: #{tpu_custom_call.1} parent=1 // pred_check_branch
      %147 = sbr.rel (0) target = $region57
    $region56: #{tpu_custom_call.1} parent=1 // pred_region
      %149 = vsyncadd [#allocation20], 0
      %s151 = sshll.u32 %s13, 4
      %s152 = int_to_ptr.hbm [resolvable:$true] %s151
      %s153 = sshll.u32 [#allocation19], 4
      %s154 = int_to_ptr.vmem [resolvable:$true] %s153
      %156 = dma.hbm_to_vmem [thread:$0]  %s152, 16, %s154, [#allocation20]
    $region57: #{tpu_custom_call.1} parent=1 // pred_fallthru
      _
    // Predicated region
    $region58: #{tpu_custom_call.1} parent=1 // pred_check
      _
    $region59: #{tpu_custom_call.1} parent=1 // pred_check_branch
      %158 = sbr.rel (0) target = $region61
    $region60: #{tpu_custom_call.1} parent=1 // pred_region
      _
    $region61: #{tpu_custom_call.1} parent=1 // pred_fallthru
      _
    // Predicated region
    $region62: #{tpu_custom_call.1} parent=1 // pred_check
      _
    $region63: #{tpu_custom_call.1} parent=1 // pred_check_branch
      %160 = sbr.rel (0) target = $region65
    $region64: #{tpu_custom_call.1} parent=1 // pred_region
      %162 = vsyncadd [#allocation20], 0
      %s164 = sshll.u32 %s15, 4
      %s165 = int_to_ptr.hbm [resolvable:$true] %s164
      %s166 = sshll.u32 [#allocation21], 4
      %s167 = int_to_ptr.vmem [resolvable:$true] %s166
      %169 = dma.hbm_to_vmem [thread:$0]  %s165, 16, %s167, [#allocation20]
    $region65: #{tpu_custom_call.1} parent=1 // pred_fallthru
      _
    // Predicated region
    $region66: #{tpu_custom_call.1} parent=1 // pred_check
      _
    $region67: #{tpu_custom_call.1} parent=1 // pred_check_branch
      %171 = sbr.rel (0) target = $region69
    $region68: #{tpu_custom_call.1} parent=1 // pred_region
      %173 = vsyncadd [#allocation23], 0
      %s175 = sshll.u32 %s16, 4
      %s176 = int_to_ptr.hbm [resolvable:$true] %s175
      %s177 = sshll.u32 [#allocation22], 4
      %s178 = int_to_ptr.vmem [resolvable:$true] %s177
      %180 = dma.hbm_to_vmem [thread:$0]  %s176, 16, %s178, [#allocation23]
    $region69: #{tpu_custom_call.1} parent=1 // pred_fallthru
      _
    // Predicated region
    $region70: #{tpu_custom_call.1} parent=1 // pred_check
      _
    $region71: #{tpu_custom_call.1} parent=1 // pred_check_branch
      %182 = sbr.rel (0) target = $region73
    $region72: #{tpu_custom_call.1} parent=1 // pred_region
      %184 = vsyncadd [#allocation23], 0
      %s186 = sshll.u32 %s17, 4
      %s187 = int_to_ptr.hbm [resolvable:$true] %s186
      %s188 = sshll.u32 [#allocation24], 4
      %s189 = int_to_ptr.vmem [resolvable:$true] %s188
      %191 = dma.hbm_to_vmem [thread:$0]  %s187, 16, %s189, [#allocation23]
    $region73: #{tpu_custom_call.1} parent=1 // pred_fallthru
      _
    // Predicated region
    $region74: #{tpu_custom_call.1} parent=1 // pred_check
      _
    $region75: #{tpu_custom_call.1} parent=1 // pred_check_branch
      %193 = sbr.rel (0) target = $region77
    $region76: #{tpu_custom_call.1} parent=1 // pred_region
      _
    $region77: #{tpu_custom_call.1} parent=1 // pred_fallthru
      _
    // Predicated region
    $region78: #{tpu_custom_call.1} parent=1 // pred_check
      _
    $region79: #{tpu_custom_call.1} parent=1 // pred_check_branch
      %195 = sbr.rel (0) target = $region81
    $region80: #{tpu_custom_call.1} parent=1 // pred_region
      %197 = vsyncadd [#allocation26], 0
      %s199 = sshll.u32 %s19, 4
      %s200 = int_to_ptr.hbm [resolvable:$true] %s199
      %s201 = sshll.u32 [#allocation25], 4
      %s202 = int_to_ptr.vmem [resolvable:$true] %s201
      %204 = dma.hbm_to_vmem [thread:$0]  %s200, 16, %s202, [#allocation26]
    $region81: #{tpu_custom_call.1} parent=1 // pred_fallthru
      _
    // Predicated region
    $region82: #{tpu_custom_call.1} parent=1 // pred_check
      _
    $region83: #{tpu_custom_call.1} parent=1 // pred_check_branch
      %206 = sbr.rel (0) target = $region85
    $region84: #{tpu_custom_call.1} parent=1 // pred_region
      %208 = vsyncadd [#allocation26], 0
      %s210 = sshll.u32 %s20, 4
      %s211 = int_to_ptr.hbm [resolvable:$true] %s210
      %s212 = sshll.u32 [#allocation27], 4
      %s213 = int_to_ptr.vmem [resolvable:$true] %s212
      %215 = dma.hbm_to_vmem [thread:$0]  %s211, 16, %s213, [#allocation26]
    $region85: #{tpu_custom_call.1} parent=1 // pred_fallthru
      _
    // Predicated region
    $region86: #{tpu_custom_call.1} parent=1 // pred_check
      _
    $region87: #{tpu_custom_call.1} parent=1 // pred_check_branch
      %217 = sbr.rel (0) target = $region89
    $region88: #{tpu_custom_call.1} parent=1 // pred_region
      %219 = vsyncadd [#allocation29], 0
      %s221 = sshll.u32 %s21, 4
      %s222 = int_to_ptr.hbm [resolvable:$true] %s221
      %s223 = sshll.u32 [#allocation28], 4
      %s224 = int_to_ptr.vmem [resolvable:$true] %s223
      %226 = dma.hbm_to_vmem [thread:$0]  %s222, 16, %s224, [#allocation29]
    $region89: #{tpu_custom_call.1} parent=1 // pred_fallthru
      _
    // Predicated region
    $region90: #{tpu_custom_call.1} parent=1 // pred_check
      _
    $region91: #{tpu_custom_call.1} parent=1 // pred_check_branch
      %228 = sbr.rel (0) target = $region93
    $region92: #{tpu_custom_call.1} parent=1 // pred_region
      _
    $region93: #{tpu_custom_call.1} parent=1 // pred_fallthru
      _
    // Predicated region
    $region94: #{tpu_custom_call.1} parent=1 // pred_check
      _
    $region95: #{tpu_custom_call.1} parent=1 // pred_check_branch
      %230 = sbr.rel (0) target = $region97
    $region96: #{tpu_custom_call.1} parent=1 // pred_region
      _
    $region97: #{tpu_custom_call.1} parent=1 // pred_fallthru
      _
    // Predicated region
    $region98: #{tpu_custom_call.1} parent=1 // pred_check
      _
    $region99: #{tpu_custom_call.1} parent=1 // pred_check_branch
      %232 = sbr.rel (0) target = $region101
    $region100: #{tpu_custom_call.1} parent=1 // pred_region
      %234 = dma.done [#allocation5], 128
    $region101: #{tpu_custom_call.1} parent=1 // pred_fallthru
      _
    // Predicated region
    $region102: #{tpu_custom_call.1} parent=1 // pred_check
      _
    $region103: #{tpu_custom_call.1} parent=1 // pred_check_branch
      %236 = sbr.rel (0) target = $region105
    $region104: #{tpu_custom_call.1} parent=1 // pred_region
      %238 = dma.done [#allocation8], 128
    $region105: #{tpu_custom_call.1} parent=1 // pred_fallthru
      _
    // Predicated region
    $region106: #{tpu_custom_call.1} parent=1 // pred_check
      _
    $region107: #{tpu_custom_call.1} parent=1 // pred_check_branch
      %240 = sbr.rel (0) target = $region109
    $region108: #{tpu_custom_call.1} parent=1 // pred_region
      %242 = dma.done [#allocation8], 16
    $region109: #{tpu_custom_call.1} parent=1 // pred_fallthru
      _
    // Predicated region
    $region110: #{tpu_custom_call.1} parent=1 // pred_check
      _
    $region111: #{tpu_custom_call.1} parent=1 // pred_check_branch
      %244 = sbr.rel (0) target = $region113
    $region112: #{tpu_custom_call.1} parent=1 // pred_region
      %246 = dma.done [#allocation11], 16
    $region113: #{tpu_custom_call.1} parent=1 // pred_fallthru
      _
    // Predicated region
    $region114: #{tpu_custom_call.1} parent=1 // pred_check
      _
    $region115: #{tpu_custom_call.1} parent=1 // pred_check_branch
      %248 = sbr.rel (0) target = $region117
    $region116: #{tpu_custom_call.1} parent=1 // pred_region
      %250 = dma.done [#allocation11], 16
    $region117: #{tpu_custom_call.1} parent=1 // pred_fallthru
      _
    // Predicated region
    $region118: #{tpu_custom_call.1} parent=1 // pred_check
      _
    $region119: #{tpu_custom_call.1} parent=1 // pred_check_branch
      %252 = sbr.rel (0) target = $region121
    $region120: #{tpu_custom_call.1} parent=1 // pred_region
      %254 = dma.done [#allocation14], 16
    $region121: #{tpu_custom_call.1} parent=1 // pred_fallthru
      _
    // Predicated region
    $region122: #{tpu_custom_call.1} parent=1 // pred_check
      _
    $region123: #{tpu_custom_call.1} parent=1 // pred_check_branch
      %256 = sbr.rel (0) target = $region125
    $region124: #{tpu_custom_call.1} parent=1 // pred_region
      %258 = dma.done [#allocation14], 16
    $region125: #{tpu_custom_call.1} parent=1 // pred_fallthru
      _
    // Predicated region
    $region126: #{tpu_custom_call.1} parent=1 // pred_check
      _
    $region127: #{tpu_custom_call.1} parent=1 // pred_check_branch
      %260 = sbr.rel (0) target = $region129
    $region128: #{tpu_custom_call.1} parent=1 // pred_region
      %262 = dma.done [#allocation17], 16
    $region129: #{tpu_custom_call.1} parent=1 // pred_fallthru
      _
    // Predicated region
    $region130: #{tpu_custom_call.1} parent=1 // pred_check
      _
    $region131: #{tpu_custom_call.1} parent=1 // pred_check_branch
      %264 = sbr.rel (0) target = $region133
    $region132: #{tpu_custom_call.1} parent=1 // pred_region
      %266 = dma.done [#allocation17], 16
    $region133: #{tpu_custom_call.1} parent=1 // pred_fallthru
      _
    // Predicated region
    $region134: #{tpu_custom_call.1} parent=1 // pred_check
      _
    $region135: #{tpu_custom_call.1} parent=1 // pred_check_branch
      %268 = sbr.rel (0) target = $region137
    $region136: #{tpu_custom_call.1} parent=1 // pred_region
      %270 = dma.done [#allocation20], 16
    $region137: #{tpu_custom_call.1} parent=1 // pred_fallthru
      _
    // Predicated region
    $region138: #{tpu_custom_call.1} parent=1 // pred_check
      _
    $region139: #{tpu_custom_call.1} parent=1 // pred_check_branch
      %272 = sbr.rel (0) target = $region141
    $region140: #{tpu_custom_call.1} parent=1 // pred_region
      %274 = dma.done [#allocation20], 16
    $region141: #{tpu_custom_call.1} parent=1 // pred_fallthru
      _
    // Predicated region
    $region142: #{tpu_custom_call.1} parent=1 // pred_check
      _
    $region143: #{tpu_custom_call.1} parent=1 // pred_check_branch
      %276 = sbr.rel (0) target = $region145
    $region144: #{tpu_custom_call.1} parent=1 // pred_region
      %278 = dma.done [#allocation23], 16
    $region145: #{tpu_custom_call.1} parent=1 // pred_fallthru
      _
    // Predicated region
    $region146: #{tpu_custom_call.1} parent=1 // pred_check
      _
    $region147: #{tpu_custom_call.1} parent=1 // pred_check_branch
      %280 = sbr.rel (0) target = $region149
    $region148: #{tpu_custom_call.1} parent=1 // pred_region
      %282 = dma.done [#allocation23], 16
    $region149: #{tpu_custom_call.1} parent=1 // pred_fallthru
      _
    // Predicated region
    $region150: #{tpu_custom_call.1} parent=1 // pred_check
      _
    $region151: #{tpu_custom_call.1} parent=1 // pred_check_branch
      %284 = sbr.rel (0) target = $region153
    $region152: #{tpu_custom_call.1} parent=1 // pred_region
      %286 = dma.done [#allocation26], 16
    $region153: #{tpu_custom_call.1} parent=1 // pred_fallthru
      _
    // Predicated region
    $region154: #{tpu_custom_call.1} parent=1 // pred_check
      _
    $region155: #{tpu_custom_call.1} parent=1 // pred_check_branch
      %288 = sbr.rel (0) target = $region157
    $region156: #{tpu_custom_call.1} parent=1 // pred_region
      %290 = dma.done [#allocation26], 16
    $region157: #{tpu_custom_call.1} parent=1 // pred_fallthru
      _
    // Predicated region
    $region158: #{tpu_custom_call.1} parent=1 // pred_check
      _
    $region159: #{tpu_custom_call.1} parent=1 // pred_check_branch
      %292 = sbr.rel (0) target = $region161
    $region160: #{tpu_custom_call.1} parent=1 // pred_region
      %294 = dma.done [#allocation29], 16
    $region161: #{tpu_custom_call.1} parent=1 // pred_fallthru
      _
    %p295 = scmp.eq.s32.totalorder 0, 0
    // Predicated region
    $region162: #{tpu_custom_call.1} parent=1 // pred_check
      %p296 = pneg %p295
    $region163: #{tpu_custom_call.1} parent=1 // pred_check_branch
      %298 = sbr.rel (%p296) target = $region165
    $region164: #{tpu_custom_call.1} parent=1 // pred_region
      %vm299 = vcmask 261120
      %300 = vst.msk [vmem:[#allocation2] sm:$0xff] %vm299, 0.0
      %vm301 = vcmask 7168
      %302 = vst.msk [vmem:[#allocation3] sm:$0xff] %vm301, 0.0
    $region165: #{tpu_custom_call.1} parent=1 // pred_fallthru
      _
    %v303 = vld [vmem:[#allocation4] sm:$0xff]
    %v304 = vld [vmem:[#allocation2] sm:$0xff]
    %v305 = vld [vmem:[%s2] sm:$0xf]
    %v306 = vld [vmem:[%s2 + $0x4] sm:$0xf]
    %v307 = vld [vmem:[%s2 + $0x8] sm:$0xf]
    %v308 = vld [vmem:[%s2 + $0xc] sm:$0xf]
    %v309 = vld [vmem:[%s2 + $0x10] sm:$0xf]
    %v310 = vld [vmem:[%s2 + $0x14] sm:$0xf]
    %v311 = vld [vmem:[%s2 + $0x18] sm:$0xf]
    %v312 = vld [vmem:[%s2 + $0x1c] sm:$0xf]
    %v313 = vld [vmem:[%s2 + $0x20] sm:$0xf]
    %v314 = vld [vmem:[%s2 + $0x24] sm:$0xf]
    %v315 = vld [vmem:[%s2 + $0x28] sm:$0xf]
    %v316 = vld [vmem:[%s2 + $0x2c] sm:$0xf]
    %v317 = vld [vmem:[%s2 + $0x30] sm:$0xf]
    %v318 = vld [vmem:[%s2 + $0x34] sm:$0xf]
    %v319 = vld [vmem:[%s2 + $0x38] sm:$0xf]
    %v320 = vld [vmem:[%s2 + $0x3c] sm:$0xf]
    %v321 = vunpack.c.l.bf16 %v305
    %v322 = vunpack.c.l.bf16 %v306
    %v323 = vunpack.c.l.bf16 %v307
    %v324 = vunpack.c.l.bf16 %v308
    %v325 = vunpack.c.l.bf16 %v309
    %v326 = vunpack.c.l.bf16 %v310
    %v327 = vunpack.c.l.bf16 %v311
    %v328 = vunpack.c.l.bf16 %v312
    %v329 = vunpack.c.l.bf16 %v313
    %v330 = vunpack.c.l.bf16 %v314
    %v331 = vunpack.c.l.bf16 %v315
    %v332 = vunpack.c.l.bf16 %v316
    %v333 = vunpack.c.l.bf16 %v317
    %v334 = vunpack.c.l.bf16 %v318
    %v335 = vunpack.c.l.bf16 %v319
    %v336 = vunpack.c.l.bf16 %v320
    %337 = vmatpush.msra.mxu0 %v336
    %338 = vmatpush.msra.mxu0 %v335
    %339 = vmatpush.msra.mxu0 %v334
    %340 = vmatpush.msra.mxu0 %v333
    %341 = vmatpush.msra.mxu0 %v332
    %342 = vmatpush.msra.mxu0 %v331
    %343 = vmatpush.msra.mxu0 %v330
    %344 = vmatpush.msra.mxu0 %v329
    %345 = vmatpush.msra.mxu0 %v328
    %346 = vmatpush.msra.mxu0 %v327
    %347 = vmatpush.msra.mxu0 %v326
    %348 = vmatpush.msra.mxu0 %v325
    %349 = vmatpush.msra.mxu0 %v324
    %350 = vmatpush.msra.mxu0 %v323
    %351 = vmatpush.msra.mxu0 %v322
    %352 = vmatpush.msra.mxu0 %v321
    %353 = vmatmul.f32.gmra.mxu0 %v303
    %v354 = vpop.f32.mrf.mxu0
    %v355 = vadd.f32 0.0, %v354
    %356 = vdwg.mxu0
    %v357 = vadd.f32 %v304, %v355
    %vm358 = vcmask 261120
    %359 = vst.msk [vmem:[#allocation2] sm:$0xff] %vm358, %v357
    %v360 = vld [vmem:[#allocation3] sm:$0xff]
    %v361 = vmul.f32 %v303, %v303
    %362 = vadd.xlane.f32.xlu0 %v361
    %v363 = vpop.xlane.xlu0 %362
    %v364 = vadd.f32 %v360, %v363
    %vm365 = vcmask 7168
    %366 = vst.msk [vmem:[#allocation3] sm:$0xff] %vm365, %v364
    // Predicated region
    $region166: #{tpu_custom_call.1} parent=1 // pred_check
      %p367 = pneg %p295
    $region167: #{tpu_custom_call.1} parent=1 // pred_check_branch
      %369 = sbr.rel (%p367) target = $region169
    $region168: #{tpu_custom_call.1} parent=1 // pred_region
      %v370 = vld [vmem:[#allocation3] sm:$0xff]
      %v371 = vadd.f32 %v370, 1e-12
      %v372 = vrsqrt.pop %v371
      %v373 = vmul.f32 %v372, %v371
      %v374 = vmul.f32 %v373, %v372
      %v375 = vmul.f32 0.5, %v374
      %v376 = vsub.f32 1.5, %v375
      %v377 = vmul.f32 %v372, %v376
      %vm378 = vweird.f32 %v371
      %vm379 = vweird.f32 %v372
      %vm380 = vmor %vm378, %vm379
      %v381 = vsel %vm380, %v372, %v377
      %v382 = vld [vmem:[#allocation2] sm:$0xff]
      %384 = vset.pattern.permute.xlu0 0
      %385 = vperm.xlu0 %384, %v381
      %v386 = vpop.permute.xlu0 %385
      %v388 = vmul.f32 %v382, %v386
      %v389 = vld [vmem:[%s3] sm:$0x1]
      %v391 = vperm.slane %v389, 0
      %v393 = vadd.f32 %v388, %v391
      %v394 = vxor.u32 %v393, 2147483648
      %v395 = vmul.f32 %v394, 1.442695
      %v396 = vpow.pop %v395
      %v397 = vadd.f32 %v396, 1.0
      %v398 = vrcp.pop %v397
      %v399 = vmul.f32 %v397, %v398
      %v400 = vsub.f32 1.0, %v399
      %v401 = vmul.f32 %v398, %v400
      %v402 = vadd.f32 %v398, %v401
      %vm403 = vweird.f32 %v397
      %vm404 = vweird.f32 %v398
      %vm405 = vmor %vm403, %vm404
      %v406 = vsel %vm405, %v398, %v402
      %v407 = vand.u32 2147483647, %v397
      %vm408 = vcmp.eq.f32.partialorder %v407, 8.507059e+37
      %v409 = vand.u32 %v397, 2147483648
      %v410 = vor.u32 1.1754944e-38, %v409
      %v411 = vsel %vm408, %v410, %v406
      %v412 = vmul.f32 1.0, %v411
      %v413 = vmul.f32 %v393, %v412
      %v414 = vsel %vm358, %v413, 0.0
      %415 = vadd.xlane.f32.xlu0 %v414
      %v416 = vpop.xlane.xlu0 %415
      %v417 = vrcp.pop 32.0
      %v418 = vmul.f32 32.0, %v417
      %v419 = vsub.f32 1.0, %v418
      %v420 = vmul.f32 %v417, %v419
      %v421 = vadd.f32 %v417, %v420
      %vm422 = vweird.f32 %v417
      %v423 = vsel %vm422, %v417, %v421
      %v424 = vmul.f32 %v416, %v423
      %v425 = vsub.f32 %v413, %v424
      %v426 = vmul.f32 %v425, %v425
      %v427 = vsel %vm358, %v426, 0.0
      %428 = vadd.xlane.f32.xlu0 %v427
      %v429 = vpop.xlane.xlu0 %428
      %v430 = vmul.f32 %v429, %v423
      %v431 = vadd.f32 %v430, 0.1
      %v432 = vrsqrt.pop %v431
      %v433 = vmul.f32 %v432, %v431
      %v434 = vmul.f32 %v433, %v432
      %v435 = vmul.f32 0.5, %v434
      %v436 = vsub.f32 1.5, %v435
      %v437 = vmul.f32 %v432, %v436
      %vm438 = vweird.f32 %v431
      %vm439 = vweird.f32 %v432
      %vm440 = vmor %vm438, %vm439
      %v441 = vsel %vm440, %v432, %v437
      %v442 = vmul.f32 %v425, %v441
      %v443 = vld [vmem:[#allocation9] sm:$0x1]
      %v445 = vperm.slane %v443, 0
      %v447 = vmul.f32 %v442, %v445
      %v448 = vld [vmem:[#allocation10] sm:$0x1]
      %v450 = vperm.slane %v448, 0
      %v452 = vadd.f32 %v447, %v450
      %v453 = vld [vmem:[%s6] sm:$0xf]
      %v454 = vld [vmem:[%s6 + $0x4] sm:$0xf]
      %v455 = vld [vmem:[%s6 + $0x8] sm:$0xf]
      %v456 = vld [vmem:[%s6 + $0xc] sm:$0xf]
      %v457 = vunpack.c.l.bf16 %v453
      %v458 = vunpack.c.l.bf16 %v454
      %v459 = vunpack.c.l.bf16 %v455
      %v460 = vunpack.c.l.bf16 %v456
      %v461 = vld [vmem:[#allocation12] sm:$0x1]
      %v463 = vperm.slane %v461, 0
      %v466 = vsel %vm358, %v452, 0
      %468 = vmatpush.msra.mxu0 0.0
      %469 = vmatpush.msra.mxu0 0.0
      %470 = vmatpush.msra.mxu0 0.0
      %471 = vmatpush.msra.mxu0 0.0
      %472 = vmatpush.msra.mxu0 0.0
      %473 = vmatpush.msra.mxu0 0.0
      %474 = vmatpush.msra.mxu0 0.0
      %475 = vmatpush.msra.mxu0 0.0
      %476 = vmatpush.msra.mxu0 0.0
      %477 = vmatpush.msra.mxu0 0.0
      %478 = vmatpush.msra.mxu0 0.0
      %479 = vmatpush.msra.mxu0 0.0
      %480 = vmatpush.msra.mxu0 %v460
      %481 = vmatpush.msra.mxu0 %v459
      %482 = vmatpush.msra.mxu0 %v458
      %483 = vmatpush.msra.mxu0 %v457
      %484 = vmatmul.f32.gmra.mxu0 %v466
      %v485 = vpop.f32.mrf.mxu0
      %v486 = vadd.f32 %v463, %v485
      %487 = vdwg.mxu0
      %v488 = vadd.f32 %v486, %v452
      %v489 = vxor.u32 %v488, 2147483648
      %v490 = vmul.f32 %v489, 1.442695
      %v491 = vpow.pop %v490
      %v492 = vadd.f32 %v491, 1.0
      %v493 = vrcp.pop %v492
      %v494 = vmul.f32 %v492, %v493
      %v495 = vsub.f32 1.0, %v494
      %v496 = vmul.f32 %v493, %v495
      %v497 = vadd.f32 %v493, %v496
      %vm498 = vweird.f32 %v492
      %vm499 = vweird.f32 %v493
      %vm500 = vmor %vm498, %vm499
      %v501 = vsel %vm500, %v493, %v497
      %v502 = vand.u32 2147483647, %v492
      %vm503 = vcmp.eq.f32.partialorder %v502, 8.507059e+37
      %v504 = vand.u32 %v492, 2147483648
      %v505 = vor.u32 1.1754944e-38, %v504
      %v506 = vsel %vm503, %v505, %v501
      %v507 = vmul.f32 1.0, %v506
      %v508 = vmul.f32 %v488, %v507
      %v509 = vsel %vm358, %v508, 0.0
      %510 = vadd.xlane.f32.xlu0 %v509
      %v511 = vpop.xlane.xlu0 %510
      %v512 = vmul.f32 %v511, %v423
      %v513 = vsub.f32 %v508, %v512
      %v514 = vmul.f32 %v513, %v513
      %v515 = vsel %vm358, %v514, 0.0
      %516 = vadd.xlane.f32.xlu0 %v515
      %v517 = vpop.xlane.xlu0 %516
      %v518 = vmul.f32 %v517, %v423
      %v519 = vadd.f32 %v518, 0.1
      %v520 = vrsqrt.pop %v519
      %v521 = vmul.f32 %v520, %v519
      %v522 = vmul.f32 %v521, %v520
      %v523 = vmul.f32 0.5, %v522
      %v524 = vsub.f32 1.5, %v523
      %v525 = vmul.f32 %v520, %v524
      %vm526 = vweird.f32 %v519
      %vm527 = vweird.f32 %v520
      %vm528 = vmor %vm526, %vm527
      %v529 = vsel %vm528, %v520, %v525
      %v530 = vmul.f32 %v513, %v529
      %v531 = vld [vmem:[#allocation13] sm:$0x1]
      %v533 = vperm.slane %v531, 0
      %v535 = vmul.f32 %v530, %v533
      %v536 = vld [vmem:[#allocation15] sm:$0x1]
      %v538 = vperm.slane %v536, 0
      %v540 = vadd.f32 %v535, %v538
      %v541 = vadd.f32 %v452, %v540
      %v542 = vld [vmem:[%s10] sm:$0xf]
      %v543 = vld [vmem:[%s10 + $0x4] sm:$0xf]
      %v544 = vld [vmem:[%s10 + $0x8] sm:$0xf]
      %v545 = vld [vmem:[%s10 + $0xc] sm:$0xf]
      %v546 = vunpack.c.l.bf16 %v542
      %v547 = vunpack.c.l.bf16 %v543
      %v548 = vunpack.c.l.bf16 %v544
      %v549 = vunpack.c.l.bf16 %v545
      %v550 = vld [vmem:[#allocation16] sm:$0x1]
      %v552 = vperm.slane %v550, 0
      %v555 = vsel %vm358, %v540, 0
      %557 = vmatpush.msra.mxu0 0.0
      %558 = vmatpush.msra.mxu0 0.0
      %559 = vmatpush.msra.mxu0 0.0
      %560 = vmatpush.msra.mxu0 0.0
      %561 = vmatpush.msra.mxu0 0.0
      %562 = vmatpush.msra.mxu0 0.0
      %563 = vmatpush.msra.mxu0 0.0
      %564 = vmatpush.msra.mxu0 0.0
      %565 = vmatpush.msra.mxu0 0.0
      %566 = vmatpush.msra.mxu0 0.0
      %567 = vmatpush.msra.mxu0 0.0
      %568 = vmatpush.msra.mxu0 0.0
      %569 = vmatpush.msra.mxu0 %v549
      %570 = vmatpush.msra.mxu0 %v548
      %571 = vmatpush.msra.mxu0 %v547
      %572 = vmatpush.msra.mxu0 %v546
      %573 = vmatmul.f32.gmra.mxu0 %v555
      %v574 = vpop.f32.mrf.mxu0
      %v575 = vadd.f32 %v552, %v574
      %576 = vdwg.mxu0
      %v577 = vadd.f32 %v575, %v541
      %v578 = vxor.u32 %v577, 2147483648
      %v579 = vmul.f32 %v578, 1.442695
      %v580 = vpow.pop %v579
      %v581 = vadd.f32 %v580, 1.0
      %v582 = vrcp.pop %v581
      %v583 = vmul.f32 %v581, %v582
      %v584 = vsub.f32 1.0, %v583
      %v585 = vmul.f32 %v582, %v584
      %v586 = vadd.f32 %v582, %v585
      %vm587 = vweird.f32 %v581
      %vm588 = vweird.f32 %v582
      %vm589 = vmor %vm587, %vm588
      %v590 = vsel %vm589, %v582, %v586
      %v591 = vand.u32 2147483647, %v581
      %vm592 = vcmp.eq.f32.partialorder %v591, 8.507059e+37
      %v593 = vand.u32 %v581, 2147483648
      %v594 = vor.u32 1.1754944e-38, %v593
      %v595 = vsel %vm592, %v594, %v590
      %v596 = vmul.f32 1.0, %v595
      %v597 = vmul.f32 %v577, %v596
      %v598 = vsel %vm358, %v597, 0.0
      %599 = vadd.xlane.f32.xlu0 %v598
      %v600 = vpop.xlane.xlu0 %599
      %v601 = vmul.f32 %v600, %v423
      %v602 = vsub.f32 %v597, %v601
      %v603 = vmul.f32 %v602, %v602
      %v604 = vsel %vm358, %v603, 0.0
      %605 = vadd.xlane.f32.xlu0 %v604
      %v606 = vpop.xlane.xlu0 %605
      %v607 = vmul.f32 %v606, %v423
      %v608 = vadd.f32 %v607, 0.1
      %v609 = vrsqrt.pop %v608
      %v610 = vmul.f32 %v609, %v608
      %v611 = vmul.f32 %v610, %v609
      %v612 = vmul.f32 0.5, %v611
      %v613 = vsub.f32 1.5, %v612
      %v614 = vmul.f32 %v609, %v613
      %vm615 = vweird.f32 %v608
      %vm616 = vweird.f32 %v609
      %vm617 = vmor %vm615, %vm616
      %v618 = vsel %vm617, %v609, %v614
      %v619 = vmul.f32 %v602, %v618
      %v620 = vld [vmem:[#allocation18] sm:$0x1]
      %v622 = vperm.slane %v620, 0
      %v624 = vmul.f32 %v619, %v622
      %v625 = vld [vmem:[#allocation19] sm:$0x1]
      %v627 = vperm.slane %v625, 0
      %v629 = vadd.f32 %v624, %v627
      %v630 = vadd.f32 %v541, %v629
      %v631 = vld [vmem:[%s14] sm:$0xf]
      %v632 = vld [vmem:[%s14 + $0x4] sm:$0xf]
      %v633 = vld [vmem:[%s14 + $0x8] sm:$0xf]
      %v634 = vld [vmem:[%s14 + $0xc] sm:$0xf]
      %v635 = vunpack.c.l.bf16 %v631
      %v636 = vunpack.c.l.bf16 %v632
      %v637 = vunpack.c.l.bf16 %v633
      %v638 = vunpack.c.l.bf16 %v634
      %v639 = vld [vmem:[#allocation21] sm:$0x1]
      %v641 = vperm.slane %v639, 0
      %v644 = vsel %vm358, %v629, 0
      %646 = vmatpush.msra.mxu0 0.0
      %647 = vmatpush.msra.mxu0 0.0
      %648 = vmatpush.msra.mxu0 0.0
      %649 = vmatpush.msra.mxu0 0.0
      %650 = vmatpush.msra.mxu0 0.0
      %651 = vmatpush.msra.mxu0 0.0
      %652 = vmatpush.msra.mxu0 0.0
      %653 = vmatpush.msra.mxu0 0.0
      %654 = vmatpush.msra.mxu0 0.0
      %655 = vmatpush.msra.mxu0 0.0
      %656 = vmatpush.msra.mxu0 0.0
      %657 = vmatpush.msra.mxu0 0.0
      %658 = vmatpush.msra.mxu0 %v638
      %659 = vmatpush.msra.mxu0 %v637
      %660 = vmatpush.msra.mxu0 %v636
      %661 = vmatpush.msra.mxu0 %v635
      %662 = vmatmul.f32.gmra.mxu0 %v644
      %v663 = vpop.f32.mrf.mxu0
      %v664 = vadd.f32 %v641, %v663
      %665 = vdwg.mxu0
      %v666 = vadd.f32 %v664, %v630
      %v667 = vxor.u32 %v666, 2147483648
      %v668 = vmul.f32 %v667, 1.442695
      %v669 = vpow.pop %v668
      %v670 = vadd.f32 %v669, 1.0
      %v671 = vrcp.pop %v670
      %v672 = vmul.f32 %v670, %v671
      %v673 = vsub.f32 1.0, %v672
      %v674 = vmul.f32 %v671, %v673
      %v675 = vadd.f32 %v671, %v674
      %vm676 = vweird.f32 %v670
      %vm677 = vweird.f32 %v671
      %vm678 = vmor %vm676, %vm677
      %v679 = vsel %vm678, %v671, %v675
      %v680 = vand.u32 2147483647, %v670
      %vm681 = vcmp.eq.f32.partialorder %v680, 8.507059e+37
      %v682 = vand.u32 %v670, 2147483648
      %v683 = vor.u32 1.1754944e-38, %v682
      %v684 = vsel %vm681, %v683, %v679
      %v685 = vmul.f32 1.0, %v684
      %v686 = vmul.f32 %v666, %v685
      %v687 = vsel %vm358, %v686, 0.0
      %688 = vadd.xlane.f32.xlu0 %v687
      %v689 = vpop.xlane.xlu0 %688
      %v690 = vmul.f32 %v689, %v423
      %v691 = vsub.f32 %v686, %v690
      %v692 = vmul.f32 %v691, %v691
      %v693 = vsel %vm358, %v692, 0.0
      %694 = vadd.xlane.f32.xlu0 %v693
      %v695 = vpop.xlane.xlu0 %694
      %v696 = vmul.f32 %v695, %v423
      %v697 = vadd.f32 %v696, 0.1
      %v698 = vrsqrt.pop %v697
      %v699 = vmul.f32 %v698, %v697
      %v700 = vmul.f32 %v699, %v698
      %v701 = vmul.f32 0.5, %v700
      %v702 = vsub.f32 1.5, %v701
      %v703 = vmul.f32 %v698, %v702
      %vm704 = vweird.f32 %v697
      %vm705 = vweird.f32 %v698
      %vm706 = vmor %vm704, %vm705
      %v707 = vsel %vm706, %v698, %v703
      %v708 = vmul.f32 %v691, %v707
      %v709 = vld [vmem:[#allocation22] sm:$0x1]
      %v711 = vperm.slane %v709, 0
      %v713 = vmul.f32 %v708, %v711
      %v714 = vld [vmem:[#allocation24] sm:$0x1]
      %v716 = vperm.slane %v714, 0
      %v718 = vadd.f32 %v713, %v716
      %v719 = vadd.f32 %v630, %v718
      %v720 = vld [vmem:[%s18] sm:$0xf]
      %v721 = vld [vmem:[%s18 + $0x4] sm:$0xf]
      %v722 = vld [vmem:[%s18 + $0x8] sm:$0xf]
      %v723 = vld [vmem:[%s18 + $0xc] sm:$0xf]
      %v724 = vunpack.c.l.bf16 %v720
      %v725 = vunpack.c.l.bf16 %v721
      %v726 = vunpack.c.l.bf16 %v722
      %v727 = vunpack.c.l.bf16 %v723
      %v728 = vld [vmem:[#allocation25] sm:$0x1]
      %v730 = vperm.slane %v728, 0
      %v733 = vsel %vm358, %v718, 0
      %735 = vmatpush.msra.mxu0 0.0
      %736 = vmatpush.msra.mxu0 0.0
      %737 = vmatpush.msra.mxu0 0.0
      %738 = vmatpush.msra.mxu0 0.0
      %739 = vmatpush.msra.mxu0 0.0
      %740 = vmatpush.msra.mxu0 0.0
      %741 = vmatpush.msra.mxu0 0.0
      %742 = vmatpush.msra.mxu0 0.0
      %743 = vmatpush.msra.mxu0 0.0
      %744 = vmatpush.msra.mxu0 0.0
      %745 = vmatpush.msra.mxu0 0.0
      %746 = vmatpush.msra.mxu0 0.0
      %747 = vmatpush.msra.mxu0 %v727
      %748 = vmatpush.msra.mxu0 %v726
      %749 = vmatpush.msra.mxu0 %v725
      %750 = vmatpush.msra.mxu0 %v724
      %751 = vmatmul.f32.gmra.mxu0 %v733
      %v752 = vpop.f32.mrf.mxu0
      %v753 = vadd.f32 %v730, %v752
      %754 = vdwg.mxu0
      %v755 = vadd.f32 %v753, %v719
      %v756 = vxor.u32 %v755, 2147483648
      %v757 = vmul.f32 %v756, 1.442695
      %v758 = vpow.pop %v757
      %v759 = vadd.f32 %v758, 1.0
      %v760 = vrcp.pop %v759
      %v761 = vmul.f32 %v759, %v760
      %v762 = vsub.f32 1.0, %v761
      %v763 = vmul.f32 %v760, %v762
      %v764 = vadd.f32 %v760, %v763
      %vm765 = vweird.f32 %v759
      %vm766 = vweird.f32 %v760
      %vm767 = vmor %vm765, %vm766
      %v768 = vsel %vm767, %v760, %v764
      %v769 = vand.u32 2147483647, %v759
      %vm770 = vcmp.eq.f32.partialorder %v769, 8.507059e+37
      %v771 = vand.u32 %v759, 2147483648
      %v772 = vor.u32 1.1754944e-38, %v771
      %v773 = vsel %vm770, %v772, %v768
      %v774 = vmul.f32 1.0, %v773
      %v775 = vmul.f32 %v755, %v774
      %v776 = vsel %vm358, %v775, 0.0
      %777 = vadd.xlane.f32.xlu0 %v776
      %v778 = vpop.xlane.xlu0 %777
      %v779 = vmul.f32 %v778, %v423
      %v780 = vsub.f32 %v775, %v779
      %v781 = vmul.f32 %v780, %v780
      %v782 = vsel %vm358, %v781, 0.0
      %783 = vadd.xlane.f32.xlu0 %v782
      %v784 = vpop.xlane.xlu0 %783
      %v785 = vmul.f32 %v784, %v423
      %v786 = vadd.f32 %v785, 0.1
      %v787 = vrsqrt.pop %v786
      %v788 = vmul.f32 %v787, %v786
      %v789 = vmul.f32 %v788, %v787
      %v790 = vmul.f32 0.5, %v789
      %v791 = vsub.f32 1.5, %v790
      %v792 = vmul.f32 %v787, %v791
      %vm793 = vweird.f32 %v786
      %vm794 = vweird.f32 %v787
      %vm795 = vmor %vm793, %vm794
      %v796 = vsel %vm795, %v787, %v792
      %v797 = vmul.f32 %v780, %v796
      %v798 = vld [vmem:[#allocation27] sm:$0x1]
      %v800 = vperm.slane %v798, 0
      %v802 = vmul.f32 %v797, %v800
      %v803 = vld [vmem:[#allocation28] sm:$0x1]
      %v805 = vperm.slane %v803, 0
      %v807 = vadd.f32 %v802, %v805
      %v808 = vld [vmem:[%s22] sm:$0xff]
      %v809 = vld [vmem:[%s22 + $0x8] sm:$0xff]
      %v810 = vld [vmem:[%s22 + $0x10] sm:$0xff]
      %v811 = vld [vmem:[%s22 + $0x18] sm:$0xff]
      %v812 = vunpack.c.l.bf16 %v808
      %v813 = vunpack.c.h.bf16 %v808
      %v814 = vunpack.c.l.bf16 %v809
      %v815 = vunpack.c.h.bf16 %v809
      %v816 = vunpack.c.l.bf16 %v810
      %v817 = vunpack.c.h.bf16 %v810
      %v818 = vunpack.c.l.bf16 %v811
      %v819 = vunpack.c.h.bf16 %v811
      %v820 = vld [vmem:[%s23] sm:$0x3]
      %v822 = vperm.slane %v820, 0
      %v823 = vperm.slane %v820, 1
      %v827 = vsel %vm358, %v807, 0
      %829 = vmatpush.msra.mxu0 0.0
      %830 = vmatpush.msra.mxu0 0.0
      %831 = vmatpush.msra.mxu0 0.0
      %832 = vmatpush.msra.mxu0 0.0
      %833 = vmatpush.msra.mxu0 0.0
      %834 = vmatpush.msra.mxu0 0.0
      %835 = vmatpush.msra.mxu0 0.0
      %836 = vmatpush.msra.mxu0 0.0
      %837 = vmatpush.msra.mxu0 0.0
      %838 = vmatpush.msra.mxu0 0.0
      %839 = vmatpush.msra.mxu0 0.0
      %840 = vmatpush.msra.mxu0 0.0
      %841 = vmatpush.msra.mxu0 %v818
      %842 = vmatpush.msra.mxu0 %v816
      %843 = vmatpush.msra.mxu0 %v814
      %844 = vmatpush.msra.mxu0 %v812
      %845 = vmatmul.f32.gmra.mxu0 %v827
      %v846 = vpop.f32.mrf.mxu0
      %v847 = vadd.f32 %v822, %v846
      %848 = vdwg.mxu0
      %849 = vmatpush.msra.mxu0 0.0
      %850 = vmatpush.msra.mxu0 0.0
      %851 = vmatpush.msra.mxu0 0.0
      %852 = vmatpush.msra.mxu0 0.0
      %853 = vmatpush.msra.mxu0 0.0
      %854 = vmatpush.msra.mxu0 0.0
      %855 = vmatpush.msra.mxu0 0.0
      %856 = vmatpush.msra.mxu0 0.0
      %857 = vmatpush.msra.mxu0 0.0
      %858 = vmatpush.msra.mxu0 0.0
      %859 = vmatpush.msra.mxu0 0.0
      %860 = vmatpush.msra.mxu0 0.0
      %861 = vmatpush.msra.mxu0 %v819
      %862 = vmatpush.msra.mxu0 %v817
      %863 = vmatpush.msra.mxu0 %v815
      %864 = vmatpush.msra.mxu0 %v813
      %865 = vmatmul.f32.gmra.mxu0 %v827
      %v866 = vpop.f32.mrf.mxu0
      %v867 = vadd.f32 %v823, %v866
      %868 = vdwg.mxu0
      %v869 = vld [vmem:[#allocation7] sm:$0xff]
      %v870 = vmul.f32 %v869, %v869
      %v871 = vmul.f32 %v870, 0.5
      %v872 = vsub.f32 -2.8160586, %v871
      %v873 = vsub.f32 %v869, %v847
      %v874 = vmul.f32 %v873, %v873
      %v875 = vsub.f32 0.0, %v867
      %v876 = vmul.f32 %v875, 1.442695
      %v877 = vpow.pop %v876
      %v878 = vmul.f32 %v874, %v877
      %v879 = vadd.f32 %v867, %v878
      %v880 = vmul.f32 %v879, 0.5
      %v881 = vsub.f32 -1.2066206, %v880
      %v882 = vmul.f32 %v870, 2.2699965e-05
      %v883 = vsub.f32 -8.221523, %v882
      %v884 = vmax.f32 %v872, %v881
      %v885 = vmax.f32 %v884, %v883
      %v886 = vsub.f32 %v872, %v885
      %v887 = vmul.f32 %v886, 1.442695
      %v888 = vpow.pop %v887
      %v889 = vsub.f32 %v881, %v885
      %v890 = vmul.f32 %v889, 1.442695
      %v891 = vpow.pop %v890
      %v892 = vadd.f32 %v888, %v891
      %v893 = vsub.f32 %v883, %v885
      %v894 = vmul.f32 %v893, 1.442695
      %v895 = vpow.pop %v894
      %v896 = vadd.f32 %v892, %v895
      %v897 = vlog2.pop %v896
      %v898 = vmul.f32 %v897, 0.6931472
      %v899 = vadd.f32 %v885, %v898
      %900 = vst [vmem:[#allocation30] sm:$0xff] %v899
    $region169: #{tpu_custom_call.1} parent=1 // pred_fallthru
      _
    // Predicated region
    $region170: #{tpu_custom_call.1} parent=1 // pred_check
      _
    $region171: #{tpu_custom_call.1} parent=1 // pred_check_branch
      %902 = sbr.rel (0) target = $region173
    $region172: #{tpu_custom_call.1} parent=1 // pred_region
      %904 = vsyncadd [#allocation6], 0
      %s906 = sshll.u32 [#allocation30], 4
      %s907 = int_to_ptr.vmem [resolvable:$true] %s906
      %s908 = sshll.u32 %s24, 4
      %s909 = int_to_ptr.hbm [resolvable:$true] %s908
      %911 = dma.vmem_to_hbm [thread:$0]  %s907, 128, %s909, [#allocation6]
    $region173: #{tpu_custom_call.1} parent=1 // pred_fallthru
      _
    // Predicated region
    $region174: #{tpu_custom_call.1} parent=1 // pred_check
      _
    $region175: #{tpu_custom_call.1} parent=1 // pred_check_branch
      %913 = sbr.rel (0) target = $region177
    $region176: #{tpu_custom_call.1} parent=1 // pred_region
      %915 = dma.done [#allocation6], 128
    $region177: #{tpu_custom_call.1} parent=1 // pred_fallthru
      _
    %916 = vsyncpa [#allocation5], 1
    %917 = vsyncpa [#allocation8], 1
    %918 = vsyncpa [#allocation11], 1
    %919 = vsyncpa [#allocation14], 1
    %920 = vsyncpa [#allocation17], 1
    %921 = vsyncpa [#allocation20], 1
    %922 = vsyncpa [#allocation23], 1
    %923 = vsyncpa [#allocation26], 1
    %924 = vsyncpa [#allocation29], 1
    %925 = vsyncpa [#allocation6], 1

</llo_original>
